<compile_context>
chip_gen: v6e
topology: v6e:2x2x1
jax: 0.10.0
libtpu: 0.0.40
codegen_flags: <defaults>
</compile_context>

<pallas_src>
import math
from functools import partial

import jax
import jax.numpy as jnp
from jax.experimental import pallas as pl
from jax.experimental.pallas import tpu as pltpu


# --------------------------------------------------------------------------
# small helpers (channel-first math, VPU-friendly for small channel counts)
# --------------------------------------------------------------------------
def _mm_cf(w, x):
    """Channel-first matmul: w (Co, Ci) @ x (Ci, TN) -> (Co, TN).

    For Ci <= 16 a matmul would pad to a full 128/256-wide MXU tile for a few
    percent utilization, so unroll into Ci broadcast multiply-adds on the VPU
    (the kernel is memory-bound; the VPU slot has slack).
    """
    ci = w.shape[1]
    if ci <= 16:
        acc = w[:, 0:1] * x[0:1, :]
        for j in range(1, ci):
            acc = acc + w[:, j:j + 1] * x[j:j + 1, :]
        return acc
    return jnp.dot(w, x, preferred_element_type=jnp.float32)


def _sum_sublanes(s):
    """sum over axis 0 (channels on sublanes), keepdims=True."""
    c = s.shape[0]
    if c <= 8:
        acc = s[0:1, :]
        for j in range(1, c):
            acc = acc + s[j:j + 1, :]
        return acc
    return jnp.sum(s, axis=0, keepdims=True)


# --------------------------------------------------------------------------
# fused kernel: grid = (batch, spatial_tiles); layer loop is in-kernel
# --------------------------------------------------------------------------
def _tsa_fused_kernel(x_ref, px_ref, a_ref, wv_ref, woff_ref,
                      xo_ref, off_ref, *, num_layers):
    x = x_ref[...]                     # (C, T)   carried locally across layers
    px = px_ref[...]                   # (C, T)

    offs = []
    for li in range(num_layers):       # static unroll; weights fully resident
        a = a_ref[li]                  # (C, C)     = scale * Wk @ Wq^T (folded)
        wv = wv_ref[li]                # (C, C)     = Wv^T
        woff = woff_ref[li]            # (n_off, C) = Woff^T

        qk = _mm_cf(a, x)                                   # (C, T)
        attn = jax.nn.sigmoid(_sum_sublanes(qk * px))       # (1, T) f32 gate
        v = _mm_cf(wv, px)                                  # (C, T)
        x = x + attn * v                                    # (C, T)
        offs.append(_mm_cf(woff, x))                        # (n_off, T)

    xo_ref[...] = x.astype(xo_ref.dtype)
    # single packed, lane-dense offsets store for all layers of this tile
    off_ref[...] = jnp.concatenate(offs, axis=0).astype(off_ref.dtype)


# --------------------------------------------------------------------------
# tile sizing: big lane-dense tiles, VMEM-budgeted, >=2 parallel grid steps
# --------------------------------------------------------------------------
def _pick_tile_hw(hw_pad, b, c, off_rows, cap=32768,
                  vmem_budget=16 * 1024 * 1024):
    """hw_pad is a multiple of 128. Returns a lane tile dividing hw_pad."""
    # f32 bytes per lane column across all (double-buffered) blocks:
    #   x, px inputs (2 bufs each) + x_out (2 bufs) + packed offsets (2 bufs)
    per_lane = (2 * c * 2 + c * 2 + off_rows * 2) * 4
    budget_cap = max(128, (vmem_budget // per_lane) // 128 * 128)
    t = min(cap, budget_cap, hw_pad)
    while hw_pad % t:
        t -= 128
    # keep b * n_tiles >= 2 so v7x's 2 TensorCores both get work
    if b * (hw_pad // t) < 2 and hw_pad % 256 == 0:
        t = hw_pad // 2
    return t


# --------------------------------------------------------------------------
# wrapper: mirrors TSA_Loop.forward
# --------------------------------------------------------------------------
def tsa_loop(x, prev_x, layer_params):
    """x, prev_x: NCHW [B, C, H, W]; layer_params: list of dicts (wq, wk, wv, woff).

    Returns (x_out NCHW, [offsets (B, n_off, H, W) per layer]).
    """
    b, c, h, w = x.shape
    hw = h * w
    num_layers = len(layer_params)
    n_off = layer_params[0]["woff"].shape[1]
    off_rows = num_layers * n_off
    scale = 1.0 / math.sqrt(c)

    # Fold scale * Wk @ Wq^T (drops one matmul + the logits scale per layer)
    # and pre-transpose weights for the channel-first (C, HW) layout.
    a_stack = jnp.stack([scale * (p["wk"] @ p["wq"].T)
                         for p in layer_params])                    # (L,C,C)
    wv_stack = jnp.stack([p["wv"].T for p in layer_params])         # (L,C,C)
    woff_stack = jnp.stack([p["woff"].T for p in layer_params])     # (L,n_off,C)

    # NCHW -> (B, C, H*W) is a pure reshape: no transpose needed.
    x_cf = x.reshape(b, c, hw)
    px_cf = prev_x.reshape(b, c, hw)

    # pad spatial dim to a multiple of 128 so every block is lane-dense
    hw_pad = ((hw + 127) // 128) * 128
    if hw_pad != hw:
        pad = hw_pad - hw
        x_cf = jnp.pad(x_cf, ((0, 0), (0, 0), (0, pad)))
        px_cf = jnp.pad(px_cf, ((0, 0), (0, 0), (0, pad)))

    tile_hw = _pick_tile_hw(hw_pad, b, c, off_rows)
    n_hw = hw_pad // tile_hw
    grid = (b, n_hw)

    kernel = partial(_tsa_fused_kernel, num_layers=num_layers)

    x_out, offs = pl.pallas_call(
        kernel,
        out_shape=(
            jax.ShapeDtypeStruct((b, c, hw_pad), jnp.float32),
            jax.ShapeDtypeStruct((b, off_rows, hw_pad), jnp.float32),
        ),
        grid_spec=pltpu.PrefetchScalarGridSpec(
            num_scalar_prefetch=0,
            grid=grid,
            in_specs=[
                # activations: one big lane-dense tile per grid step
                pl.BlockSpec((None, c, tile_hw), lambda bi, si: (bi, 0, si)),
                pl.BlockSpec((None, c, tile_hw), lambda bi, si: (bi, 0, si)),
                # weights: fully resident stacks, constant block index
                pl.BlockSpec((num_layers, c, c), lambda bi, si: (0, 0, 0)),
                pl.BlockSpec((num_layers, c, c), lambda bi, si: (0, 0, 0)),
                pl.BlockSpec((num_layers, n_off, c), lambda bi, si: (0, 0, 0)),
            ],
            out_specs=[
                pl.BlockSpec((None, c, tile_hw), lambda bi, si: (bi, 0, si)),
                # packed offsets for all layers: single lane-dense store/tile
                pl.BlockSpec((None, off_rows, tile_hw),
                             lambda bi, si: (bi, 0, si)),
            ],
        ),
        compiler_params=pltpu.CompilerParams(
            dimension_semantics=("parallel", "parallel")),
    )(x_cf, px_cf, a_stack, wv_stack, woff_stack)

    x_out_nchw = x_out[:, :, :hw].reshape(b, c, h, w)
    offsets_list = [
        offs[:, l * n_off:(l + 1) * n_off, :hw].reshape(b, n_off, h, w)
        for l in range(num_layers)
    ]
    return x_out_nchw, offsets_list


tsa_loop_jit = jax.jit(tsa_loop)


# --------------------------------------------------------------------------
# pure-JAX reference (unfused, row-major) for correctness checking
# --------------------------------------------------------------------------
def tsa_loop_reference(x, prev_x, layer_params):
    b, c, h, w = x.shape
    xf = jnp.transpose(x, (0, 2, 3, 1)).reshape(-1, c)
    pf = jnp.transpose(prev_x, (0, 2, 3, 1)).reshape(-1, c)
    offsets = []
    for p in layer_params:
        q = xf @ p["wq"]
        k = pf @ p["wk"]
        v = pf @ p["wv"]
        attn = jax.nn.sigmoid(jnp.sum(q * k, -1, keepdims=True) / math.sqrt(c))
        xf = xf + attn * v
        off = xf @ p["woff"]
        offsets.append(jnp.transpose(off.reshape(b, h, w, -1), (0, 3, 1, 2)))
    return jnp.transpose(xf.reshape(b, h, w, c), (0, 3, 1, 2)), offsets


def make_layer_params(key, num_layers, c, n_off=2):
    params = []
    for _ in range(num_layers):
        k0, k1, k2, k3, key = jax.random.split(key, 5)
        scale = 1.0 / math.sqrt(c)
        params.append(dict(
            wq=jax.random.normal(k0, (c, c), jnp.float32) * scale,
            wk=jax.random.normal(k1, (c, c), jnp.float32) * scale,
            wv=jax.random.normal(k2, (c, c), jnp.float32) * scale,
            woff=jax.random.normal(k3, (c, n_off), jnp.float32) * scale,
        ))
    return params


if __name__ == "__main__":
    B, C, H, W = 2, 4, 16, 16
    NUM_LAYERS = 3

    key = jax.random.PRNGKey(0)
    kx, kp, kw = jax.random.split(key, 3)
    x = jax.random.normal(kx, (B, C, H, W), jnp.float32)
    prev_x = jax.random.normal(kp, (B, C, H, W), jnp.float32)

    layer_params = make_layer_params(kw, NUM_LAYERS, C)

    x_out, offsets_list = tsa_loop_jit(x, prev_x, layer_params)
    x_out = jax.block_until_ready(x_out)
    offsets_list = [jax.block_until_ready(o) for o in offsets_list]

    assert x_out.shape == (B, C, H, W)
    assert len(offsets_list) == NUM_LAYERS
    assert all(o.shape == (B, 2, H, W) for o in offsets_list)

    # Check against the unfused pure-JAX reference.
    x_ref, offs_ref = tsa_loop_reference(x, prev_x, layer_params)
    assert jnp.allclose(x_out, x_ref, atol=1e-3, rtol=1e-3)
    for o, r in zip(offsets_list, offs_ref):
        assert jnp.allclose(o, r, atol=1e-3, rtol=1e-3)

    print("KERNEL_OK")
</pallas_src>

<mosaic_0001>
module attributes {stable_mosaic.version = 11 : i64} {
  func.func @_tsa_fused_kernel(%arg0: i32, %arg1: i32, %arg2: memref<1x4x256xf32, #tpu.memory_space<vmem>>, %arg3: memref<1x4x256xf32, #tpu.memory_space<vmem>>, %arg4: memref<3x4x4xf32, #tpu.memory_space<vmem>>, %arg5: memref<3x4x4xf32, #tpu.memory_space<vmem>>, %arg6: memref<3x2x4xf32, #tpu.memory_space<vmem>>, %arg7: memref<1x4x256xf32, #tpu.memory_space<vmem>>, %arg8: memref<1x6x256xf32, #tpu.memory_space<vmem>>) attributes {dimension_semantics = [#tpu.dimension_semantics<parallel>, #tpu.dimension_semantics<parallel>], iteration_bounds = array<i64: 2, 1>, scalar_prefetch = 0 : i64, scratch_operands = 0 : i64, tpu.core_type = #tpu.core_type<tc>, window_params = [{transform_indices = @transform_0, window_bounds = array<i64: 1, 4, 256>}, {transform_indices = @transform_1, window_bounds = array<i64: 1, 4, 256>}, {pipeline_mode = #tpu.pipeline_mode<synchronous>, transform_indices = @transform_2, window_bounds = array<i64: 3, 4, 4>}, {pipeline_mode = #tpu.pipeline_mode<synchronous>, transform_indices = @transform_3, window_bounds = array<i64: 3, 4, 4>}, {pipeline_mode = #tpu.pipeline_mode<synchronous>, transform_indices = @transform_4, window_bounds = array<i64: 3, 2, 4>}, {transform_indices = @transform_5, window_bounds = array<i64: 1, 4, 256>}, {transform_indices = @transform_6, window_bounds = array<i64: 1, 6, 256>}]} {
    %c0 = arith.constant 0 : index
    %c0_0 = arith.constant 0 : index
    %c0_1 = arith.constant 0 : index
    %0 = vector.load %arg2[%c0, %c0_0, %c0_1] : memref<1x4x256xf32, #tpu.memory_space<vmem>>, vector<1x4x256xf32>
    %1 = vector.shape_cast %0 : vector<1x4x256xf32> to vector<4x256xf32>
    %c0_2 = arith.constant 0 : index
    %c0_3 = arith.constant 0 : index
    %c0_4 = arith.constant 0 : index
    %2 = vector.load %arg3[%c0_2, %c0_3, %c0_4] : memref<1x4x256xf32, #tpu.memory_space<vmem>>, vector<1x4x256xf32>
    %3 = vector.shape_cast %2 : vector<1x4x256xf32> to vector<4x256xf32>
    %c0_5 = arith.constant 0 : index
    %c0_6 = arith.constant 0 : index
    %c0_7 = arith.constant 0 : index
    %4 = vector.load %arg4[%c0_5, %c0_6, %c0_7] : memref<3x4x4xf32, #tpu.memory_space<vmem>>, vector<1x4x4xf32>
    %5 = vector.shape_cast %4 : vector<1x4x4xf32> to vector<4x4xf32>
    %c0_8 = arith.constant 0 : index
    %c0_9 = arith.constant 0 : index
    %c0_10 = arith.constant 0 : index
    %6 = vector.load %arg5[%c0_8, %c0_9, %c0_10] : memref<3x4x4xf32, #tpu.memory_space<vmem>>, vector<1x4x4xf32>
    %7 = vector.shape_cast %6 : vector<1x4x4xf32> to vector<4x4xf32>
    %c0_11 = arith.constant 0 : index
    %c0_12 = arith.constant 0 : index
    %c0_13 = arith.constant 0 : index
    %8 = vector.load %arg6[%c0_11, %c0_12, %c0_13] : memref<3x2x4xf32, #tpu.memory_space<vmem>>, vector<1x2x4xf32>
    %9 = vector.shape_cast %8 : vector<1x2x4xf32> to vector<2x4xf32>
    %10 = vector.extract_strided_slice %5 {offsets = [0, 0], sizes = [4, 1], strides = [1, 1]} : vector<4x4xf32> to vector<4x1xf32>
    %11 = vector.extract_strided_slice %1 {offsets = [0, 0], sizes = [1, 256], strides = [1, 1]} : vector<4x256xf32> to vector<1x256xf32>
    %12 = vector.broadcast %10 : vector<4x1xf32> to vector<4x256xf32>
    %13 = vector.broadcast %11 : vector<1x256xf32> to vector<4x256xf32>
    %14 = arith.mulf %12, %13 : vector<4x256xf32>
    %15 = vector.extract_strided_slice %5 {offsets = [0, 1], sizes = [4, 1], strides = [1, 1]} : vector<4x4xf32> to vector<4x1xf32>
    %16 = vector.extract_strided_slice %1 {offsets = [1, 0], sizes = [1, 256], strides = [1, 1]} : vector<4x256xf32> to vector<1x256xf32>
    %17 = vector.broadcast %15 : vector<4x1xf32> to vector<4x256xf32>
    %18 = vector.broadcast %16 : vector<1x256xf32> to vector<4x256xf32>
    %19 = arith.mulf %17, %18 : vector<4x256xf32>
    %20 = arith.addf %14, %19 : vector<4x256xf32>
    %21 = vector.extract_strided_slice %5 {offsets = [0, 2], sizes = [4, 1], strides = [1, 1]} : vector<4x4xf32> to vector<4x1xf32>
    %22 = vector.extract_strided_slice %1 {offsets = [2, 0], sizes = [1, 256], strides = [1, 1]} : vector<4x256xf32> to vector<1x256xf32>
    %23 = vector.broadcast %21 : vector<4x1xf32> to vector<4x256xf32>
    %24 = vector.broadcast %22 : vector<1x256xf32> to vector<4x256xf32>
    %25 = arith.mulf %23, %24 : vector<4x256xf32>
    %26 = arith.addf %20, %25 : vector<4x256xf32>
    %27 = vector.extract_strided_slice %5 {offsets = [0, 3], sizes = [4, 1], strides = [1, 1]} : vector<4x4xf32> to vector<4x1xf32>
    %28 = vector.extract_strided_slice %1 {offsets = [3, 0], sizes = [1, 256], strides = [1, 1]} : vector<4x256xf32> to vector<1x256xf32>
    %29 = vector.broadcast %27 : vector<4x1xf32> to vector<4x256xf32>
    %30 = vector.broadcast %28 : vector<1x256xf32> to vector<4x256xf32>
    %31 = arith.mulf %29, %30 : vector<4x256xf32>
    %32 = arith.addf %26, %31 : vector<4x256xf32>
    %33 = arith.mulf %32, %3 : vector<4x256xf32>
    %34 = vector.extract_strided_slice %33 {offsets = [0, 0], sizes = [1, 256], strides = [1, 1]} : vector<4x256xf32> to vector<1x256xf32>
    %35 = vector.extract_strided_slice %33 {offsets = [1, 0], sizes = [1, 256], strides = [1, 1]} : vector<4x256xf32> to vector<1x256xf32>
    %36 = arith.addf %34, %35 : vector<1x256xf32>
    %37 = vector.extract_strided_slice %33 {offsets = [2, 0], sizes = [1, 256], strides = [1, 1]} : vector<4x256xf32> to vector<1x256xf32>
    %38 = arith.addf %36, %37 : vector<1x256xf32>
    %39 = vector.extract_strided_slice %33 {offsets = [3, 0], sizes = [1, 256], strides = [1, 1]} : vector<4x256xf32> to vector<1x256xf32>
    %40 = arith.addf %38, %39 : vector<1x256xf32>
    %41 = arith.negf %40 : vector<1x256xf32>
    %42 = math.exp %41 : vector<1x256xf32>
    %cst = arith.constant 1.000000e+00 : f32
    %43 = vector.broadcast %cst : f32 to vector<1x256xf32>
    %44 = arith.addf %43, %42 : vector<1x256xf32>
    %45 = arith.divf %43, %44 : vector<1x256xf32>
    %46 = vector.extract_strided_slice %7 {offsets = [0, 0], sizes = [4, 1], strides = [1, 1]} : vector<4x4xf32> to vector<4x1xf32>
    %47 = vector.extract_strided_slice %3 {offsets = [0, 0], sizes = [1, 256], strides = [1, 1]} : vector<4x256xf32> to vector<1x256xf32>
    %48 = vector.broadcast %46 : vector<4x1xf32> to vector<4x256xf32>
    %49 = vector.broadcast %47 : vector<1x256xf32> to vector<4x256xf32>
    %50 = arith.mulf %48, %49 : vector<4x256xf32>
    %51 = vector.extract_strided_slice %7 {offsets = [0, 1], sizes = [4, 1], strides = [1, 1]} : vector<4x4xf32> to vector<4x1xf32>
    %52 = vector.extract_strided_slice %3 {offsets = [1, 0], sizes = [1, 256], strides = [1, 1]} : vector<4x256xf32> to vector<1x256xf32>
    %53 = vector.broadcast %51 : vector<4x1xf32> to vector<4x256xf32>
    %54 = vector.broadcast %52 : vector<1x256xf32> to vector<4x256xf32>
    %55 = arith.mulf %53, %54 : vector<4x256xf32>
    %56 = arith.addf %50, %55 : vector<4x256xf32>
    %57 = vector.extract_strided_slice %7 {offsets = [0, 2], sizes = [4, 1], strides = [1, 1]} : vector<4x4xf32> to vector<4x1xf32>
    %58 = vector.extract_strided_slice %3 {offsets = [2, 0], sizes = [1, 256], strides = [1, 1]} : vector<4x256xf32> to vector<1x256xf32>
    %59 = vector.broadcast %57 : vector<4x1xf32> to vector<4x256xf32>
    %60 = vector.broadcast %58 : vector<1x256xf32> to vector<4x256xf32>
    %61 = arith.mulf %59, %60 : vector<4x256xf32>
    %62 = arith.addf %56, %61 : vector<4x256xf32>
    %63 = vector.extract_strided_slice %7 {offsets = [0, 3], sizes = [4, 1], strides = [1, 1]} : vector<4x4xf32> to vector<4x1xf32>
    %64 = vector.extract_strided_slice %3 {offsets = [3, 0], sizes = [1, 256], strides = [1, 1]} : vector<4x256xf32> to vector<1x256xf32>
    %65 = vector.broadcast %63 : vector<4x1xf32> to vector<4x256xf32>
    %66 = vector.broadcast %64 : vector<1x256xf32> to vector<4x256xf32>
    %67 = arith.mulf %65, %66 : vector<4x256xf32>
    %68 = arith.addf %62, %67 : vector<4x256xf32>
    %69 = vector.broadcast %45 : vector<1x256xf32> to vector<4x256xf32>
    %70 = arith.mulf %69, %68 : vector<4x256xf32>
    %71 = arith.addf %1, %70 : vector<4x256xf32>
    %72 = vector.extract_strided_slice %9 {offsets = [0, 0], sizes = [2, 1], strides = [1, 1]} : vector<2x4xf32> to vector<2x1xf32>
    %73 = vector.extract_strided_slice %71 {offsets = [0, 0], sizes = [1, 256], strides = [1, 1]} : vector<4x256xf32> to vector<1x256xf32>
    %74 = vector.broadcast %72 : vector<2x1xf32> to vector<2x256xf32>
    %75 = vector.broadcast %73 : vector<1x256xf32> to vector<2x256xf32>
    %76 = arith.mulf %74, %75 : vector<2x256xf32>
    %77 = vector.extract_strided_slice %9 {offsets = [0, 1], sizes = [2, 1], strides = [1, 1]} : vector<2x4xf32> to vector<2x1xf32>
    %78 = vector.extract_strided_slice %71 {offsets = [1, 0], sizes = [1, 256], strides = [1, 1]} : vector<4x256xf32> to vector<1x256xf32>
    %79 = vector.broadcast %77 : vector<2x1xf32> to vector<2x256xf32>
    %80 = vector.broadcast %78 : vector<1x256xf32> to vector<2x256xf32>
    %81 = arith.mulf %79, %80 : vector<2x256xf32>
    %82 = arith.addf %76, %81 : vector<2x256xf32>
    %83 = vector.extract_strided_slice %9 {offsets = [0, 2], sizes = [2, 1], strides = [1, 1]} : vector<2x4xf32> to vector<2x1xf32>
    %84 = vector.extract_strided_slice %71 {offsets = [2, 0], sizes = [1, 256], strides = [1, 1]} : vector<4x256xf32> to vector<1x256xf32>
    %85 = vector.broadcast %83 : vector<2x1xf32> to vector<2x256xf32>
    %86 = vector.broadcast %84 : vector<1x256xf32> to vector<2x256xf32>
    %87 = arith.mulf %85, %86 : vector<2x256xf32>
    %88 = arith.addf %82, %87 : vector<2x256xf32>
    %89 = vector.extract_strided_slice %9 {offsets = [0, 3], sizes = [2, 1], strides = [1, 1]} : vector<2x4xf32> to vector<2x1xf32>
    %90 = vector.extract_strided_slice %71 {offsets = [3, 0], sizes = [1, 256], strides = [1, 1]} : vector<4x256xf32> to vector<1x256xf32>
    %91 = vector.broadcast %89 : vector<2x1xf32> to vector<2x256xf32>
    %92 = vector.broadcast %90 : vector<1x256xf32> to vector<2x256xf32>
    %93 = arith.mulf %91, %92 : vector<2x256xf32>
    %94 = arith.addf %88, %93 : vector<2x256xf32>
    %c1 = arith.constant 1 : index
    %c0_14 = arith.constant 0 : index
    %c0_15 = arith.constant 0 : index
    %95 = vector.load %arg4[%c1, %c0_14, %c0_15] : memref<3x4x4xf32, #tpu.memory_space<vmem>>, vector<1x4x4xf32>
    %96 = vector.shape_cast %95 : vector<1x4x4xf32> to vector<4x4xf32>
    %c1_16 = arith.constant 1 : index
    %c0_17 = arith.constant 0 : index
    %c0_18 = arith.constant 0 : index
    %97 = vector.load %arg5[%c1_16, %c0_17, %c0_18] : memref<3x4x4xf32, #tpu.memory_space<vmem>>, vector<1x4x4xf32>
    %98 = vector.shape_cast %97 : vector<1x4x4xf32> to vector<4x4xf32>
    %c1_19 = arith.constant 1 : index
    %c0_20 = arith.constant 0 : index
    %c0_21 = arith.constant 0 : index
    %99 = vector.load %arg6[%c1_19, %c0_20, %c0_21] : memref<3x2x4xf32, #tpu.memory_space<vmem>>, vector<1x2x4xf32>
    %100 = vector.shape_cast %99 : vector<1x2x4xf32> to vector<2x4xf32>
    %101 = vector.extract_strided_slice %96 {offsets = [0, 0], sizes = [4, 1], strides = [1, 1]} : vector<4x4xf32> to vector<4x1xf32>
    %102 = vector.extract_strided_slice %71 {offsets = [0, 0], sizes = [1, 256], strides = [1, 1]} : vector<4x256xf32> to vector<1x256xf32>
    %103 = vector.broadcast %101 : vector<4x1xf32> to vector<4x256xf32>
    %104 = vector.broadcast %102 : vector<1x256xf32> to vector<4x256xf32>
    %105 = arith.mulf %103, %104 : vector<4x256xf32>
    %106 = vector.extract_strided_slice %96 {offsets = [0, 1], sizes = [4, 1], strides = [1, 1]} : vector<4x4xf32> to vector<4x1xf32>
    %107 = vector.extract_strided_slice %71 {offsets = [1, 0], sizes = [1, 256], strides = [1, 1]} : vector<4x256xf32> to vector<1x256xf32>
    %108 = vector.broadcast %106 : vector<4x1xf32> to vector<4x256xf32>
    %109 = vector.broadcast %107 : vector<1x256xf32> to vector<4x256xf32>
    %110 = arith.mulf %108, %109 : vector<4x256xf32>
    %111 = arith.addf %105, %110 : vector<4x256xf32>
    %112 = vector.extract_strided_slice %96 {offsets = [0, 2], sizes = [4, 1], strides = [1, 1]} : vector<4x4xf32> to vector<4x1xf32>
    %113 = vector.extract_strided_slice %71 {offsets = [2, 0], sizes = [1, 256], strides = [1, 1]} : vector<4x256xf32> to vector<1x256xf32>
    %114 = vector.broadcast %112 : vector<4x1xf32> to vector<4x256xf32>
    %115 = vector.broadcast %113 : vector<1x256xf32> to vector<4x256xf32>
    %116 = arith.mulf %114, %115 : vector<4x256xf32>
    %117 = arith.addf %111, %116 : vector<4x256xf32>
    %118 = vector.extract_strided_slice %96 {offsets = [0, 3], sizes = [4, 1], strides = [1, 1]} : vector<4x4xf32> to vector<4x1xf32>
    %119 = vector.extract_strided_slice %71 {offsets = [3, 0], sizes = [1, 256], strides = [1, 1]} : vector<4x256xf32> to vector<1x256xf32>
    %120 = vector.broadcast %118 : vector<4x1xf32> to vector<4x256xf32>
    %121 = vector.broadcast %119 : vector<1x256xf32> to vector<4x256xf32>
    %122 = arith.mulf %120, %121 : vector<4x256xf32>
    %123 = arith.addf %117, %122 : vector<4x256xf32>
    %124 = arith.mulf %123, %3 : vector<4x256xf32>
    %125 = vector.extract_strided_slice %124 {offsets = [0, 0], sizes = [1, 256], strides = [1, 1]} : vector<4x256xf32> to vector<1x256xf32>
    %126 = vector.extract_strided_slice %124 {offsets = [1, 0], sizes = [1, 256], strides = [1, 1]} : vector<4x256xf32> to vector<1x256xf32>
    %127 = arith.addf %125, %126 : vector<1x256xf32>
    %128 = vector.extract_strided_slice %124 {offsets = [2, 0], sizes = [1, 256], strides = [1, 1]} : vector<4x256xf32> to vector<1x256xf32>
    %129 = arith.addf %127, %128 : vector<1x256xf32>
    %130 = vector.extract_strided_slice %124 {offsets = [3, 0], sizes = [1, 256], strides = [1, 1]} : vector<4x256xf32> to vector<1x256xf32>
    %131 = arith.addf %129, %130 : vector<1x256xf32>
    %132 = arith.negf %131 : vector<1x256xf32>
    %133 = math.exp %132 : vector<1x256xf32>
    %cst_22 = arith.constant 1.000000e+00 : f32
    %134 = vector.broadcast %cst_22 : f32 to vector<1x256xf32>
    %135 = arith.addf %134, %133 : vector<1x256xf32>
    %136 = arith.divf %134, %135 : vector<1x256xf32>
    %137 = vector.extract_strided_slice %98 {offsets = [0, 0], sizes = [4, 1], strides = [1, 1]} : vector<4x4xf32> to vector<4x1xf32>
    %138 = vector.extract_strided_slice %3 {offsets = [0, 0], sizes = [1, 256], strides = [1, 1]} : vector<4x256xf32> to vector<1x256xf32>
    %139 = vector.broadcast %137 : vector<4x1xf32> to vector<4x256xf32>
    %140 = vector.broadcast %138 : vector<1x256xf32> to vector<4x256xf32>
    %141 = arith.mulf %139, %140 : vector<4x256xf32>
    %142 = vector.extract_strided_slice %98 {offsets = [0, 1], sizes = [4, 1], strides = [1, 1]} : vector<4x4xf32> to vector<4x1xf32>
    %143 = vector.extract_strided_slice %3 {offsets = [1, 0], sizes = [1, 256], strides = [1, 1]} : vector<4x256xf32> to vector<1x256xf32>
    %144 = vector.broadcast %142 : vector<4x1xf32> to vector<4x256xf32>
    %145 = vector.broadcast %143 : vector<1x256xf32> to vector<4x256xf32>
    %146 = arith.mulf %144, %145 : vector<4x256xf32>
    %147 = arith.addf %141, %146 : vector<4x256xf32>
    %148 = vector.extract_strided_slice %98 {offsets = [0, 2], sizes = [4, 1], strides = [1, 1]} : vector<4x4xf32> to vector<4x1xf32>
    %149 = vector.extract_strided_slice %3 {offsets = [2, 0], sizes = [1, 256], strides = [1, 1]} : vector<4x256xf32> to vector<1x256xf32>
    %150 = vector.broadcast %148 : vector<4x1xf32> to vector<4x256xf32>
    %151 = vector.broadcast %149 : vector<1x256xf32> to vector<4x256xf32>
    %152 = arith.mulf %150, %151 : vector<4x256xf32>
    %153 = arith.addf %147, %152 : vector<4x256xf32>
    %154 = vector.extract_strided_slice %98 {offsets = [0, 3], sizes = [4, 1], strides = [1, 1]} : vector<4x4xf32> to vector<4x1xf32>
    %155 = vector.extract_strided_slice %3 {offsets = [3, 0], sizes = [1, 256], strides = [1, 1]} : vector<4x256xf32> to vector<1x256xf32>
    %156 = vector.broadcast %154 : vector<4x1xf32> to vector<4x256xf32>
    %157 = vector.broadcast %155 : vector<1x256xf32> to vector<4x256xf32>
    %158 = arith.mulf %156, %157 : vector<4x256xf32>
    %159 = arith.addf %153, %158 : vector<4x256xf32>
    %160 = vector.broadcast %136 : vector<1x256xf32> to vector<4x256xf32>
    %161 = arith.mulf %160, %159 : vector<4x256xf32>
    %162 = arith.addf %71, %161 : vector<4x256xf32>
    %163 = vector.extract_strided_slice %100 {offsets = [0, 0], sizes = [2, 1], strides = [1, 1]} : vector<2x4xf32> to vector<2x1xf32>
    %164 = vector.extract_strided_slice %162 {offsets = [0, 0], sizes = [1, 256], strides = [1, 1]} : vector<4x256xf32> to vector<1x256xf32>
    %165 = vector.broadcast %163 : vector<2x1xf32> to vector<2x256xf32>
    %166 = vector.broadcast %164 : vector<1x256xf32> to vector<2x256xf32>
    %167 = arith.mulf %165, %166 : vector<2x256xf32>
    %168 = vector.extract_strided_slice %100 {offsets = [0, 1], sizes = [2, 1], strides = [1, 1]} : vector<2x4xf32> to vector<2x1xf32>
    %169 = vector.extract_strided_slice %162 {offsets = [1, 0], sizes = [1, 256], strides = [1, 1]} : vector<4x256xf32> to vector<1x256xf32>
    %170 = vector.broadcast %168 : vector<2x1xf32> to vector<2x256xf32>
    %171 = vector.broadcast %169 : vector<1x256xf32> to vector<2x256xf32>
    %172 = arith.mulf %170, %171 : vector<2x256xf32>
    %173 = arith.addf %167, %172 : vector<2x256xf32>
    %174 = vector.extract_strided_slice %100 {offsets = [0, 2], sizes = [2, 1], strides = [1, 1]} : vector<2x4xf32> to vector<2x1xf32>
    %175 = vector.extract_strided_slice %162 {offsets = [2, 0], sizes = [1, 256], strides = [1, 1]} : vector<4x256xf32> to vector<1x256xf32>
    %176 = vector.broadcast %174 : vector<2x1xf32> to vector<2x256xf32>
    %177 = vector.broadcast %175 : vector<1x256xf32> to vector<2x256xf32>
    %178 = arith.mulf %176, %177 : vector<2x256xf32>
    %179 = arith.addf %173, %178 : vector<2x256xf32>
    %180 = vector.extract_strided_slice %100 {offsets = [0, 3], sizes = [2, 1], strides = [1, 1]} : vector<2x4xf32> to vector<2x1xf32>
    %181 = vector.extract_strided_slice %162 {offsets = [3, 0], sizes = [1, 256], strides = [1, 1]} : vector<4x256xf32> to vector<1x256xf32>
    %182 = vector.broadcast %180 : vector<2x1xf32> to vector<2x256xf32>
    %183 = vector.broadcast %181 : vector<1x256xf32> to vector<2x256xf32>
    %184 = arith.mulf %182, %183 : vector<2x256xf32>
    %185 = arith.addf %179, %184 : vector<2x256xf32>
    %c2 = arith.constant 2 : index
    %c0_23 = arith.constant 0 : index
    %c0_24 = arith.constant 0 : index
    %186 = vector.load %arg4[%c2, %c0_23, %c0_24] : memref<3x4x4xf32, #tpu.memory_space<vmem>>, vector<1x4x4xf32>
    %187 = vector.shape_cast %186 : vector<1x4x4xf32> to vector<4x4xf32>
    %c2_25 = arith.constant 2 : index
    %c0_26 = arith.constant 0 : index
    %c0_27 = arith.constant 0 : index
    %188 = vector.load %arg5[%c2_25, %c0_26, %c0_27] : memref<3x4x4xf32, #tpu.memory_space<vmem>>, vector<1x4x4xf32>
    %189 = vector.shape_cast %188 : vector<1x4x4xf32> to vector<4x4xf32>
    %c2_28 = arith.constant 2 : index
    %c0_29 = arith.constant 0 : index
    %c0_30 = arith.constant 0 : index
    %190 = vector.load %arg6[%c2_28, %c0_29, %c0_30] : memref<3x2x4xf32, #tpu.memory_space<vmem>>, vector<1x2x4xf32>
    %191 = vector.shape_cast %190 : vector<1x2x4xf32> to vector<2x4xf32>
    %192 = vector.extract_strided_slice %187 {offsets = [0, 0], sizes = [4, 1], strides = [1, 1]} : vector<4x4xf32> to vector<4x1xf32>
    %193 = vector.extract_strided_slice %162 {offsets = [0, 0], sizes = [1, 256], strides = [1, 1]} : vector<4x256xf32> to vector<1x256xf32>
    %194 = vector.broadcast %192 : vector<4x1xf32> to vector<4x256xf32>
    %195 = vector.broadcast %193 : vector<1x256xf32> to vector<4x256xf32>
    %196 = arith.mulf %194, %195 : vector<4x256xf32>
    %197 = vector.extract_strided_slice %187 {offsets = [0, 1], sizes = [4, 1], strides = [1, 1]} : vector<4x4xf32> to vector<4x1xf32>
    %198 = vector.extract_strided_slice %162 {offsets = [1, 0], sizes = [1, 256], strides = [1, 1]} : vector<4x256xf32> to vector<1x256xf32>
    %199 = vector.broadcast %197 : vector<4x1xf32> to vector<4x256xf32>
    %200 = vector.broadcast %198 : vector<1x256xf32> to vector<4x256xf32>
    %201 = arith.mulf %199, %200 : vector<4x256xf32>
    %202 = arith.addf %196, %201 : vector<4x256xf32>
    %203 = vector.extract_strided_slice %187 {offsets = [0, 2], sizes = [4, 1], strides = [1, 1]} : vector<4x4xf32> to vector<4x1xf32>
    %204 = vector.extract_strided_slice %162 {offsets = [2, 0], sizes = [1, 256], strides = [1, 1]} : vector<4x256xf32> to vector<1x256xf32>
    %205 = vector.broadcast %203 : vector<4x1xf32> to vector<4x256xf32>
    %206 = vector.broadcast %204 : vector<1x256xf32> to vector<4x256xf32>
    %207 = arith.mulf %205, %206 : vector<4x256xf32>
    %208 = arith.addf %202, %207 : vector<4x256xf32>
    %209 = vector.extract_strided_slice %187 {offsets = [0, 3], sizes = [4, 1], strides = [1, 1]} : vector<4x4xf32> to vector<4x1xf32>
    %210 = vector.extract_strided_slice %162 {offsets = [3, 0], sizes = [1, 256], strides = [1, 1]} : vector<4x256xf32> to vector<1x256xf32>
    %211 = vector.broadcast %209 : vector<4x1xf32> to vector<4x256xf32>
    %212 = vector.broadcast %210 : vector<1x256xf32> to vector<4x256xf32>
    %213 = arith.mulf %211, %212 : vector<4x256xf32>
    %214 = arith.addf %208, %213 : vector<4x256xf32>
    %215 = arith.mulf %214, %3 : vector<4x256xf32>
    %216 = vector.extract_strided_slice %215 {offsets = [0, 0], sizes = [1, 256], strides = [1, 1]} : vector<4x256xf32> to vector<1x256xf32>
    %217 = vector.extract_strided_slice %215 {offsets = [1, 0], sizes = [1, 256], strides = [1, 1]} : vector<4x256xf32> to vector<1x256xf32>
    %218 = arith.addf %216, %217 : vector<1x256xf32>
    %219 = vector.extract_strided_slice %215 {offsets = [2, 0], sizes = [1, 256], strides = [1, 1]} : vector<4x256xf32> to vector<1x256xf32>
    %220 = arith.addf %218, %219 : vector<1x256xf32>
    %221 = vector.extract_strided_slice %215 {offsets = [3, 0], sizes = [1, 256], strides = [1, 1]} : vector<4x256xf32> to vector<1x256xf32>
    %222 = arith.addf %220, %221 : vector<1x256xf32>
    %223 = arith.negf %222 : vector<1x256xf32>
    %224 = math.exp %223 : vector<1x256xf32>
    %cst_31 = arith.constant 1.000000e+00 : f32
    %225 = vector.broadcast %cst_31 : f32 to vector<1x256xf32>
    %226 = arith.addf %225, %224 : vector<1x256xf32>
    %227 = arith.divf %225, %226 : vector<1x256xf32>
    %228 = vector.extract_strided_slice %189 {offsets = [0, 0], sizes = [4, 1], strides = [1, 1]} : vector<4x4xf32> to vector<4x1xf32>
    %229 = vector.extract_strided_slice %3 {offsets = [0, 0], sizes = [1, 256], strides = [1, 1]} : vector<4x256xf32> to vector<1x256xf32>
    %230 = vector.broadcast %228 : vector<4x1xf32> to vector<4x256xf32>
    %231 = vector.broadcast %229 : vector<1x256xf32> to vector<4x256xf32>
    %232 = arith.mulf %230, %231 : vector<4x256xf32>
    %233 = vector.extract_strided_slice %189 {offsets = [0, 1], sizes = [4, 1], strides = [1, 1]} : vector<4x4xf32> to vector<4x1xf32>
    %234 = vector.extract_strided_slice %3 {offsets = [1, 0], sizes = [1, 256], strides = [1, 1]} : vector<4x256xf32> to vector<1x256xf32>
    %235 = vector.broadcast %233 : vector<4x1xf32> to vector<4x256xf32>
    %236 = vector.broadcast %234 : vector<1x256xf32> to vector<4x256xf32>
    %237 = arith.mulf %235, %236 : vector<4x256xf32>
    %238 = arith.addf %232, %237 : vector<4x256xf32>
    %239 = vector.extract_strided_slice %189 {offsets = [0, 2], sizes = [4, 1], strides = [1, 1]} : vector<4x4xf32> to vector<4x1xf32>
    %240 = vector.extract_strided_slice %3 {offsets = [2, 0], sizes = [1, 256], strides = [1, 1]} : vector<4x256xf32> to vector<1x256xf32>
    %241 = vector.broadcast %239 : vector<4x1xf32> to vector<4x256xf32>
    %242 = vector.broadcast %240 : vector<1x256xf32> to vector<4x256xf32>
    %243 = arith.mulf %241, %242 : vector<4x256xf32>
    %244 = arith.addf %238, %243 : vector<4x256xf32>
    %245 = vector.extract_strided_slice %189 {offsets = [0, 3], sizes = [4, 1], strides = [1, 1]} : vector<4x4xf32> to vector<4x1xf32>
    %246 = vector.extract_strided_slice %3 {offsets = [3, 0], sizes = [1, 256], strides = [1, 1]} : vector<4x256xf32> to vector<1x256xf32>
    %247 = vector.broadcast %245 : vector<4x1xf32> to vector<4x256xf32>
    %248 = vector.broadcast %246 : vector<1x256xf32> to vector<4x256xf32>
    %249 = arith.mulf %247, %248 : vector<4x256xf32>
    %250 = arith.addf %244, %249 : vector<4x256xf32>
    %251 = vector.broadcast %227 : vector<1x256xf32> to vector<4x256xf32>
    %252 = arith.mulf %251, %250 : vector<4x256xf32>
    %253 = arith.addf %162, %252 : vector<4x256xf32>
    %254 = vector.extract_strided_slice %191 {offsets = [0, 0], sizes = [2, 1], strides = [1, 1]} : vector<2x4xf32> to vector<2x1xf32>
    %255 = vector.extract_strided_slice %253 {offsets = [0, 0], sizes = [1, 256], strides = [1, 1]} : vector<4x256xf32> to vector<1x256xf32>
    %256 = vector.broadcast %254 : vector<2x1xf32> to vector<2x256xf32>
    %257 = vector.broadcast %255 : vector<1x256xf32> to vector<2x256xf32>
    %258 = arith.mulf %256, %257 : vector<2x256xf32>
    %259 = vector.extract_strided_slice %191 {offsets = [0, 1], sizes = [2, 1], strides = [1, 1]} : vector<2x4xf32> to vector<2x1xf32>
    %260 = vector.extract_strided_slice %253 {offsets = [1, 0], sizes = [1, 256], strides = [1, 1]} : vector<4x256xf32> to vector<1x256xf32>
    %261 = vector.broadcast %259 : vector<2x1xf32> to vector<2x256xf32>
    %262 = vector.broadcast %260 : vector<1x256xf32> to vector<2x256xf32>
    %263 = arith.mulf %261, %262 : vector<2x256xf32>
    %264 = arith.addf %258, %263 : vector<2x256xf32>
    %265 = vector.extract_strided_slice %191 {offsets = [0, 2], sizes = [2, 1], strides = [1, 1]} : vector<2x4xf32> to vector<2x1xf32>
    %266 = vector.extract_strided_slice %253 {offsets = [2, 0], sizes = [1, 256], strides = [1, 1]} : vector<4x256xf32> to vector<1x256xf32>
    %267 = vector.broadcast %265 : vector<2x1xf32> to vector<2x256xf32>
    %268 = vector.broadcast %266 : vector<1x256xf32> to vector<2x256xf32>
    %269 = arith.mulf %267, %268 : vector<2x256xf32>
    %270 = arith.addf %264, %269 : vector<2x256xf32>
    %271 = vector.extract_strided_slice %191 {offsets = [0, 3], sizes = [2, 1], strides = [1, 1]} : vector<2x4xf32> to vector<2x1xf32>
    %272 = vector.extract_strided_slice %253 {offsets = [3, 0], sizes = [1, 256], strides = [1, 1]} : vector<4x256xf32> to vector<1x256xf32>
    %273 = vector.broadcast %271 : vector<2x1xf32> to vector<2x256xf32>
    %274 = vector.broadcast %272 : vector<1x256xf32> to vector<2x256xf32>
    %275 = arith.mulf %273, %274 : vector<2x256xf32>
    %276 = arith.addf %270, %275 : vector<2x256xf32>
    %c0_32 = arith.constant 0 : index
    %c0_33 = arith.constant 0 : index
    %c0_34 = arith.constant 0 : index
    %277 = vector.load %arg7[%c0_32, %c0_33, %c0_34] : memref<1x4x256xf32, #tpu.memory_space<vmem>>, vector<1x4x256xf32>
    %278 = vector.shape_cast %277 : vector<1x4x256xf32> to vector<4x256xf32>
    %279 = vector.shape_cast %253 : vector<4x256xf32> to vector<1x4x256xf32>
    tpu.vector_store %arg7[%c0_32, %c0_33, %c0_34], %279 {strides = array<i32>} : memref<1x4x256xf32, #tpu.memory_space<vmem>>, vector<1x4x256xf32>,
    %280 = tpu.concatenate %94, %185, %276 in 0 : vector<2x256xf32>, vector<2x256xf32>, vector<2x256xf32> -> vector<6x256xf32>
    %c0_35 = arith.constant 0 : index
    %c0_36 = arith.constant 0 : index
    %c0_37 = arith.constant 0 : index
    %281 = vector.load %arg8[%c0_35, %c0_36, %c0_37] : memref<1x6x256xf32, #tpu.memory_space<vmem>>, vector<1x6x256xf32>
    %282 = vector.shape_cast %281 : vector<1x6x256xf32> to vector<6x256xf32>
    %283 = vector.shape_cast %280 : vector<6x256xf32> to vector<1x6x256xf32>
    tpu.vector_store %arg8[%c0_35, %c0_36, %c0_37], %283 {strides = array<i32>} : memref<1x6x256xf32, #tpu.memory_space<vmem>>, vector<1x6x256xf32>,
    return
  }
  func.func @transform_0(%arg0: i32, %arg1: i32) -> (i32, i32, i32) {
    %c0_i32 = arith.constant 0 : i32
    %c0_i32_0 = arith.constant 0 : i32
    return %arg0, %c0_i32, %arg1 : i32, i32, i32
  }
  func.func @transform_1(%arg0: i32, %arg1: i32) -> (i32, i32, i32) {
    %c0_i32 = arith.constant 0 : i32
    %c0_i32_0 = arith.constant 0 : i32
    return %arg0, %c0_i32, %arg1 : i32, i32, i32
  }
  func.func @transform_2(%arg0: i32, %arg1: i32) -> (i32, i32, i32) {
    %c0_i32 = arith.constant 0 : i32
    %c0_i32_0 = arith.constant 0 : i32
    %c0_i32_1 = arith.constant 0 : i32
    %c0_i32_2 = arith.constant 0 : i32
    return %c0_i32, %c0_i32_0, %c0_i32_1 : i32, i32, i32
  }
  func.func @transform_3(%arg0: i32, %arg1: i32) -> (i32, i32, i32) {
    %c0_i32 = arith.constant 0 : i32
    %c0_i32_0 = arith.constant 0 : i32
    %c0_i32_1 = arith.constant 0 : i32
    %c0_i32_2 = arith.constant 0 : i32
    return %c0_i32, %c0_i32_0, %c0_i32_1 : i32, i32, i32
  }
  func.func @transform_4(%arg0: i32, %arg1: i32) -> (i32, i32, i32) {
    %c0_i32 = arith.constant 0 : i32
    %c0_i32_0 = arith.constant 0 : i32
    %c0_i32_1 = arith.constant 0 : i32
    %c0_i32_2 = arith.constant 0 : i32
    return %c0_i32, %c0_i32_0, %c0_i32_1 : i32, i32, i32
  }
  func.func @transform_5(%arg0: i32, %arg1: i32) -> (i32, i32, i32) {
    %c0_i32 = arith.constant 0 : i32
    %c0_i32_0 = arith.constant 0 : i32
    return %arg0, %c0_i32, %arg1 : i32, i32, i32
  }
  func.func @transform_6(%arg0: i32, %arg1: i32) -> (i32, i32, i32) {
    %c0_i32 = arith.constant 0 : i32
    %c0_i32_0 = arith.constant 0 : i32
    return %arg0, %c0_i32, %arg1 : i32, i32, i32
  }
}

</mosaic_0001>

<llo_original>
// kernel: tsa_loop.1
$region0: #{tsa_loop.1}
  #allocation0 [shape = 'u32[]', space=smem, size = 0x4, offset = 0x4, fixed_abs, tag = 'smem constant byte address 0x4 - core index']
  #allocation1 [shape = 'u32[144,128]{1,0:T(1,128)}', space=vmem, size = 0x12000, scoped, tag = 'internal scratch']
  %s0 = inlined_call_operand.vmem [shape: f32[2,4,256], index: 0, kind: input, shape index: {}]
  %s1 = inlined_call_operand.vmem [shape: f32[2,4,256], index: 1, kind: input, shape index: {}]
  %s2 = inlined_call_operand.vmem [shape: f32[3,4,4], index: 2, kind: input, shape index: {}]
  %s3 = inlined_call_operand.vmem [shape: f32[3,4,4], index: 3, kind: input, shape index: {}]
  %s4 = inlined_call_operand.vmem [shape: f32[3,2,4], index: 4, kind: input, shape index: {}]
  %s5 = inlined_call_operand.vmem [shape: f32[2,4,256], index: 5, kind: output, shape index: {0}]
  %s6 = inlined_call_operand.vmem [shape: f32[2,6,256], index: 6, kind: output, shape index: {1}]
  %7 = xla_tuple %s5, %s6
  %s8 = sld [smem:[#allocation0]]
  $region61: #{tsa_loop.1} parent=0
    _
  %s10 = ssub.s32 1, %s8
  %s11 = scalar_select 0, %s10, %s8
  loop: start=0, step=1, limit=4
  $region2: #{tsa_loop.1} parent=0 // loop_pre_header
    _
  $region3: #{tsa_loop.1} parent=0 // loop_header
    %s13 = sphi 0, %s17
    %p14 = scmp.ge.s32.totalorder %s13, 4
    %s20 = sphi 0, %s32
    %s21 = sphi 0, %s28
    %s22 = sphi 0, %s20
    %s23 = sphi 0, %s21
    %s24 = sphi 0, %s22
    %s25 = sphi 0, %s23
    %s37 = sphi 0, %s39
    %s40 = sphi 0, %s37
    %s41 = sphi 0, %s40
    %s57 = sphi 0, %s41
    %s65 = sphi 0, %s67
    %s68 = sphi 0, %s65
    %s69 = sphi 0, %s68
    %s85 = sphi 0, %s69
    %s89 = sphi 0, %s89
    %s91 = sphi 0, %s89
    %s92 = sphi 0, %s91
    %s106 = sphi 0, %s92
    %s110 = sphi 0, %s110
    %s112 = sphi 0, %s110
    %s113 = sphi 0, %s112
    %s127 = sphi 0, %s113
    %s131 = sphi 0, %s131
    %s133 = sphi 0, %s131
    %s134 = sphi 0, %s133
    %s148 = sphi 0, %s134
    %s156 = sphi 0, %s158
    %s159 = sphi 0, %s156
    %s160 = sphi 0, %s159
    %s176 = sphi 0, %s160
    %s184 = sphi 0, %s186
    %s187 = sphi 0, %s184
    %s188 = sphi 0, %s187
    %s204 = sphi 0, %s188
  $region4: #{tsa_loop.1} parent=0 // loop_header_branch
    %16 = sbr.rel (%p14) target = $region8
  $region5: #{tsa_loop.1} parent=0 // loop_body
    %s18 = ssub.s32 %s13, 1
    %s19 = ssub.s32 %s13, 2
    %s26 = sadd.s32 1, %s21
    %p27 = scmp.ge.s32.totalorder %s26, 1
    %s28 = scalar_select %p27, 0, %s26
    %s29 = sadd.s32 1, %s20
    %s30 = scalar_select %p27, %s29, %s20
    %p31 = scmp.ge.s32.totalorder %s30, 2
    %s32 = scalar_select %p31, 0, %s30
    %s33 = ssub.s32 %s20, %s32
    %s34 = ssub.s32 %s21, %s28
    %s35 = sor.u32 %s33, %s34
    %p36 = scmp.eq.s32.totalorder %s35, 0
    %s38 = sadd.s32 %s37, 1
    %s39 = scalar_select %p36, %s37, %s38
    %p42 = pneg %p36
    %p43 = scmp.eq.s32.totalorder %s13, 1
    %p44 = por %p42, %p43
    %p45 = scmp.ne.s32.totalorder %s37, %s40
    %p46 = scmp.eq.s32.totalorder %s13, 0
    %p47 = por %p45, %p46
    %p48 = scmp.ne.s32.totalorder %s37, %s40
    %p49 = scmp.eq.s32.totalorder %s18, 1
    %p50 = por %p48, %p49
    %p51 = scmp.ne.s32.totalorder %s40, %s41
    %p52 = scmp.eq.s32.totalorder %s18, 0
    %p53 = por %p51, %p52
    %p54 = scmp.ne.s32.totalorder %s40, %s41
    %p55 = scmp.eq.s32.totalorder %s19, 1
    %p56 = por %p54, %p55
    %p58 = scmp.ne.s32.totalorder %s41, %s57
    %p59 = scmp.eq.s32.totalorder %s19, 0
    %p60 = por %p58, %p59
    %s61 = ssub.s32 %s20, %s32
    %s62 = ssub.s32 %s21, %s28
    %s63 = sor.u32 %s61, %s62
    %p64 = scmp.eq.s32.totalorder %s63, 0
    %s66 = sadd.s32 %s65, 1
    %s67 = scalar_select %p64, %s65, %s66
    %p70 = pneg %p64
    %p71 = scmp.eq.s32.totalorder %s13, 1
    %p72 = por %p70, %p71
    %p73 = scmp.ne.s32.totalorder %s65, %s68
    %p74 = scmp.eq.s32.totalorder %s13, 0
    %p75 = por %p73, %p74
    %p76 = scmp.ne.s32.totalorder %s65, %s68
    %p77 = scmp.eq.s32.totalorder %s18, 1
    %p78 = por %p76, %p77
    %p79 = scmp.ne.s32.totalorder %s68, %s69
    %p80 = scmp.eq.s32.totalorder %s18, 0
    %p81 = por %p79, %p80
    %p82 = scmp.ne.s32.totalorder %s68, %s69
    %p83 = scmp.eq.s32.totalorder %s19, 1
    %p84 = por %p82, %p83
    %p86 = scmp.ne.s32.totalorder %s69, %s85
    %p87 = scmp.eq.s32.totalorder %s19, 0
    %p88 = por %p86, %p87
    %s90 = sadd.s32 %s89, 1
    %p93 = scmp.eq.s32.totalorder %s13, 1
    %p94 = scmp.ne.s32.totalorder %s89, %s91
    %p95 = scmp.eq.s32.totalorder %s13, 0
    %p96 = por %p94, %p95
    %p97 = scmp.ne.s32.totalorder %s89, %s91
    %p98 = scmp.eq.s32.totalorder %s18, 1
    %p99 = por %p97, %p98
    %p100 = scmp.ne.s32.totalorder %s91, %s92
    %p101 = scmp.eq.s32.totalorder %s18, 0
    %p102 = por %p100, %p101
    %p103 = scmp.ne.s32.totalorder %s91, %s92
    %p104 = scmp.eq.s32.totalorder %s19, 1
    %p105 = por %p103, %p104
    %p107 = scmp.ne.s32.totalorder %s92, %s106
    %p108 = scmp.eq.s32.totalorder %s19, 0
    %p109 = por %p107, %p108
    %s111 = sadd.s32 %s110, 1
    %p114 = scmp.eq.s32.totalorder %s13, 1
    %p115 = scmp.ne.s32.totalorder %s110, %s112
    %p116 = scmp.eq.s32.totalorder %s13, 0
    %p117 = por %p115, %p116
    %p118 = scmp.ne.s32.totalorder %s110, %s112
    %p119 = scmp.eq.s32.totalorder %s18, 1
    %p120 = por %p118, %p119
    %p121 = scmp.ne.s32.totalorder %s112, %s113
    %p122 = scmp.eq.s32.totalorder %s18, 0
    %p123 = por %p121, %p122
    %p124 = scmp.ne.s32.totalorder %s112, %s113
    %p125 = scmp.eq.s32.totalorder %s19, 1
    %p126 = por %p124, %p125
    %p128 = scmp.ne.s32.totalorder %s113, %s127
    %p129 = scmp.eq.s32.totalorder %s19, 0
    %p130 = por %p128, %p129
    %s132 = sadd.s32 %s131, 1
    %p135 = scmp.eq.s32.totalorder %s13, 1
    %p136 = scmp.ne.s32.totalorder %s131, %s133
    %p137 = scmp.eq.s32.totalorder %s13, 0
    %p138 = por %p136, %p137
    %p139 = scmp.ne.s32.totalorder %s131, %s133
    %p140 = scmp.eq.s32.totalorder %s18, 1
    %p141 = por %p139, %p140
    %p142 = scmp.ne.s32.totalorder %s133, %s134
    %p143 = scmp.eq.s32.totalorder %s18, 0
    %p144 = por %p142, %p143
    %p145 = scmp.ne.s32.totalorder %s133, %s134
    %p146 = scmp.eq.s32.totalorder %s19, 1
    %p147 = por %p145, %p146
    %p149 = scmp.ne.s32.totalorder %s134, %s148
    %p150 = scmp.eq.s32.totalorder %s19, 0
    %p151 = por %p149, %p150
    %s152 = ssub.s32 %s20, %s32
    %s153 = ssub.s32 %s21, %s28
    %s154 = sor.u32 %s152, %s153
    %p155 = scmp.eq.s32.totalorder %s154, 0
    %s157 = sadd.s32 %s156, 1
    %s158 = scalar_select %p155, %s156, %s157
    %p161 = pneg %p155
    %p162 = scmp.eq.s32.totalorder %s13, 1
    %p163 = por %p161, %p162
    %p164 = scmp.ne.s32.totalorder %s156, %s159
    %p165 = scmp.eq.s32.totalorder %s13, 0
    %p166 = por %p164, %p165
    %p167 = scmp.ne.s32.totalorder %s156, %s159
    %p168 = scmp.eq.s32.totalorder %s18, 1
    %p169 = por %p167, %p168
    %p170 = scmp.ne.s32.totalorder %s159, %s160
    %p171 = scmp.eq.s32.totalorder %s18, 0
    %p172 = por %p170, %p171
    %p173 = scmp.ne.s32.totalorder %s159, %s160
    %p174 = scmp.eq.s32.totalorder %s19, 1
    %p175 = por %p173, %p174
    %p177 = scmp.ne.s32.totalorder %s160, %s176
    %p178 = scmp.eq.s32.totalorder %s19, 0
    %p179 = por %p177, %p178
    %s180 = ssub.s32 %s20, %s32
    %s181 = ssub.s32 %s21, %s28
    %s182 = sor.u32 %s180, %s181
    %p183 = scmp.eq.s32.totalorder %s182, 0
    %s185 = sadd.s32 %s184, 1
    %s186 = scalar_select %p183, %s184, %s185
    %p189 = pneg %p183
    %p190 = scmp.eq.s32.totalorder %s13, 1
    %p191 = por %p189, %p190
    %p192 = scmp.ne.s32.totalorder %s184, %s187
    %p193 = scmp.eq.s32.totalorder %s13, 0
    %p194 = por %p192, %p193
    %p195 = scmp.ne.s32.totalorder %s184, %s187
    %p196 = scmp.eq.s32.totalorder %s18, 1
    %p197 = por %p195, %p196
    %p198 = scmp.ne.s32.totalorder %s187, %s188
    %p199 = scmp.eq.s32.totalorder %s18, 0
    %p200 = por %p198, %p199
    %p201 = scmp.ne.s32.totalorder %s187, %s188
    %p202 = scmp.eq.s32.totalorder %s19, 1
    %p203 = por %p201, %p202
    %p205 = scmp.ne.s32.totalorder %s188, %s204
    %p206 = scmp.eq.s32.totalorder %s19, 0
    %p207 = por %p205, %p206
    %p208 = scmp.le.s32.totalorder 1, %s13
    %p209 = scmp.lt.s32.totalorder %s13, 3
    %p210 = pnand %p208, %p209
    %p211 = pneg %p210
    // Predicated region
    $region9: #{tsa_loop.1} parent=5 // pred_check
      _
    $region10: #{tsa_loop.1} parent=5 // pred_check_branch
      %213 = sbr.rel (%p210) target = $region12
    $region11: #{tsa_loop.1} parent=5 // pred_region
      %s214 = ssub.s32 %s13, 1
      // Predicated region
      $region13: #{tsa_loop.1} parent=11 // pred_check
        %p215 = pneg %p102
      $region14: #{tsa_loop.1} parent=11 // pred_check_branch
        %217 = sbr.rel (%p215) target = $region16
      $region15: #{tsa_loop.1} parent=11 // pred_region
        _
      $region16: #{tsa_loop.1} parent=11 // pred_fallthru
        _
      // Predicated region
      $region17: #{tsa_loop.1} parent=11 // pred_check
        %p218 = pneg %p123
      $region18: #{tsa_loop.1} parent=11 // pred_check_branch
        %220 = sbr.rel (%p218) target = $region20
      $region19: #{tsa_loop.1} parent=11 // pred_region
        _
      $region20: #{tsa_loop.1} parent=11 // pred_fallthru
        _
      // Predicated region
      $region21: #{tsa_loop.1} parent=11 // pred_check
        %p221 = pneg %p144
      $region22: #{tsa_loop.1} parent=11 // pred_check_branch
        %223 = sbr.rel (%p221) target = $region24
      $region23: #{tsa_loop.1} parent=11 // pred_region
        _
      $region24: #{tsa_loop.1} parent=11 // pred_fallthru
        _
    $region12: #{tsa_loop.1} parent=5 // pred_fallthru
      _
    %p224 = scmp.lt.s32.totalorder %s13, 2
    // Predicated region
    $region25: #{tsa_loop.1} parent=5 // pred_check
      %p225 = pneg %p224
    $region26: #{tsa_loop.1} parent=5 // pred_check_branch
      %227 = sbr.rel (%p225) target = $region28
    $region27: #{tsa_loop.1} parent=5 // pred_region
      // Predicated region
      $region29: #{tsa_loop.1} parent=27 // pred_check
        %p228 = pneg %p47
      $region30: #{tsa_loop.1} parent=27 // pred_check_branch
        %230 = sbr.rel (%p228) target = $region32
      $region31: #{tsa_loop.1} parent=27 // pred_region
        %s231 = smul.u32 2, %s21
        %p232 = scmp.lt.s32.totalorder %s20, 1
        %s233 = scalar_select %p232, %s20, 1
        %p234 = scmp.lt.s32.totalorder %s231, 1
        %s235 = scalar_select %p234, %s231, 1
        %s236 = smul.addr %s233, 2
        %s237 = sadd.s32 %s235, %s236
        %s238 = smul.addr %s237, 4
        %s239 = scalar_lea.vmem %s0, %s238
        %s240 = smul.u32 2, %s21
      $region32: #{tsa_loop.1} parent=27 // pred_fallthru
        _
      // Predicated region
      $region33: #{tsa_loop.1} parent=27 // pred_check
        %p241 = pneg %p75
      $region34: #{tsa_loop.1} parent=27 // pred_check_branch
        %243 = sbr.rel (%p241) target = $region36
      $region35: #{tsa_loop.1} parent=27 // pred_region
        %s244 = smul.u32 2, %s21
        %p245 = scmp.lt.s32.totalorder %s20, 1
        %s246 = scalar_select %p245, %s20, 1
        %p247 = scmp.lt.s32.totalorder %s244, 1
        %s248 = scalar_select %p247, %s244, 1
        %s249 = smul.addr %s246, 2
        %s250 = sadd.s32 %s248, %s249
        %s251 = smul.addr %s250, 4
        %s252 = scalar_lea.vmem %s1, %s251
        %s253 = smul.u32 2, %s21
      $region36: #{tsa_loop.1} parent=27 // pred_fallthru
        _
    $region28: #{tsa_loop.1} parent=5 // pred_fallthru
      _
    %p254 = scmp.le.s32.totalorder 1, %s13
    %p255 = scmp.lt.s32.totalorder %s13, 3
    %p256 = pnand %p254, %p255
    %p257 = pneg %p256
    // Predicated region
    $region37: #{tsa_loop.1} parent=5 // pred_check
      _
    $region38: #{tsa_loop.1} parent=5 // pred_check_branch
      %259 = sbr.rel (%p256) target = $region40
    $region39: #{tsa_loop.1} parent=5 // pred_region
      %s260 = ssub.s32 %s13, 1
      %s261 = smul.u32 2, %s23
      %p262 = scmp.lt.s32.totalorder %s22, 1
      %s263 = scalar_select %p262, %s22, 1
      %p264 = scmp.lt.s32.totalorder %s261, 1
      %s265 = scalar_select %p264, %s261, 1
      %s266 = smul.addr %s263, 2
      %s267 = sadd.s32 %s265, %s266
      %s268 = smul.addr %s267, 4
      %s269 = scalar_lea.vmem %s0, %s268
      %p270 = pneg %p53
      %p271 = pneg %p50
      %s272 = smul.u32 2, %s23
      %p273 = scmp.lt.s32.totalorder %s22, 1
      %s274 = scalar_select %p273, %s22, 1
      %p275 = scmp.lt.s32.totalorder %s272, 1
      %s276 = scalar_select %p275, %s272, 1
      %s277 = smul.addr %s274, 2
      %s278 = sadd.s32 %s276, %s277
      %s279 = smul.addr %s278, 4
      %s280 = scalar_lea.vmem %s1, %s279
      %p281 = pneg %p81
      %p282 = pneg %p78
      %p283 = pneg %p102
      %p284 = pneg %p99
      %p285 = pneg %p123
      %p286 = pneg %p120
      %p287 = pneg %p144
      %p288 = pneg %p141
      %p289 = pneg %p172
      %p290 = pneg %p169
      %s291 = smul.u32 2, %s23
      %p292 = scmp.lt.s32.totalorder %s22, 1
      %s293 = scalar_select %p292, %s22, 1
      %p294 = scmp.lt.s32.totalorder %s291, 1
      %s295 = scalar_select %p294, %s291, 1
      %s296 = smul.addr %s293, 2
      %s297 = sadd.s32 %s295, %s296
      %s298 = smul.addr %s297, 4
      %s299 = scalar_lea.vmem %s5, %s298
      %p300 = pneg %p200
      %p301 = pneg %p197
      %s302 = smul.u32 2, %s23
      %p303 = scmp.lt.s32.totalorder %s22, 1
      %s304 = scalar_select %p303, %s22, 1
      %p305 = scmp.lt.s32.totalorder %s302, 1
      %s306 = scalar_select %p305, %s302, 1
      %s307 = smul.addr %s304, 2
      %s308 = sadd.s32 %s306, %s307
      %s309 = smul.addr %s308, 8
      %s310 = scalar_lea.vmem %s6, %s309
      %s311 = smul.u32 2, %s23
      %p312 = scmp.lt.s32.totalorder %s22, 1
      %s313 = scalar_select %p312, %s22, 1
      %p314 = scmp.lt.s32.totalorder %s311, 1
      %s315 = scalar_select %p314, %s311, 1
      %s316 = smul.addr %s313, 2
      %s317 = sadd.s32 %s315, %s316
      %s318 = smul.addr %s317, 4
      %s319 = scalar_lea.vmem %s0, %s318
      %s320 = smul.u32 2, %s23
      %s321 = smul.u32 2, %s23
      %p322 = scmp.lt.s32.totalorder %s22, 1
      %s323 = scalar_select %p322, %s22, 1
      %p324 = scmp.lt.s32.totalorder %s321, 1
      %s325 = scalar_select %p324, %s321, 1
      %s326 = smul.addr %s323, 2
      %s327 = sadd.s32 %s325, %s326
      %s328 = smul.addr %s327, 4
      %s329 = scalar_lea.vmem %s1, %s328
      %s330 = smul.u32 2, %s23
      %s331 = smul.u32 2, %s23
      %p332 = scmp.lt.s32.totalorder %s22, 1
      %s333 = scalar_select %p332, %s22, 1
      %p334 = scmp.lt.s32.totalorder %s331, 1
      %s335 = scalar_select %p334, %s331, 1
      %s336 = smul.addr %s333, 2
      %s337 = sadd.s32 %s335, %s336
      %s338 = smul.addr %s337, 4
      %s339 = scalar_lea.vmem %s5, %s338
      %s340 = smul.u32 2, %s23
      %s341 = smul.u32 2, %s23
      %p342 = scmp.lt.s32.totalorder %s22, 1
      %s343 = scalar_select %p342, %s22, 1
      %p344 = scmp.lt.s32.totalorder %s341, 1
      %s345 = scalar_select %p344, %s341, 1
      %s346 = smul.addr %s343, 2
      %s347 = sadd.s32 %s345, %s346
      %s348 = smul.addr %s347, 8
      %s349 = scalar_lea.vmem %s6, %s348
      %s350 = smul.u32 2, %s23
      %v351 = vld [vmem:[%s319] sm:$0xff]
      %v352 = vld [vmem:[%s329] sm:$0xff]
      %v353 = vld [vmem:[%s2] sm:$0xf]
      %v354 = vld [vmem:[%s3] sm:$0xf]
      %v355 = vld [vmem:[%s4] sm:$0x3]
      %357 = vset.pattern.permute.xlu0 0
      %358 = vperm.xlu0 %357, %v353
      %v359 = vpop.permute.xlu0 %358
      %v362 = vlaneseq
      %v363 = vshrl.u32 %v362, 7
      %v364 = vsub.s32 0, %v363
      %v365 = vrot.slane %v351, %v364
      %v366 = vlaneseq
      %v367 = vshrl.u32 %v366, 7
      %v368 = vsub.s32 4, %v367
      %v369 = vrot.slane %v351, %v368
      %v372 = vlaneseq
      %v373 = vshrl.u32 %v372, 7
      %v374 = vsub.s32 0, %v373
      %v375 = vrot.slane %v365, %v374
      %v376 = vlaneseq
      %v377 = vshrl.u32 %v376, 7
      %v378 = vsub.s32 0, %v377
      %v379 = vrot.slane %v369, %v378
      %v380 = vmul.f32 %v359, %v375
      %v381 = vmul.f32 %v359, %v379
      %382 = vset.pattern.permute.xlu0 1
      %383 = vperm.xlu0 %382, %v353
      %v384 = vpop.permute.xlu0 %383
      %v386 = vlaneseq
      %v387 = vshrl.u32 %v386, 7
      %v388 = vsub.s32 1, %v387
      %v389 = vrot.slane %v351, %v388
      %v390 = vlaneseq
      %v391 = vshrl.u32 %v390, 7
      %v392 = vsub.s32 5, %v391
      %v393 = vrot.slane %v351, %v392
      %v396 = vlaneseq
      %v397 = vshrl.u32 %v396, 7
      %v398 = vsub.s32 1, %v397
      %v399 = vrot.slane %v389, %v398
      %v400 = vlaneseq
      %v401 = vshrl.u32 %v400, 7
      %v402 = vsub.s32 1, %v401
      %v403 = vrot.slane %v393, %v402
      %v404 = vmul.f32 %v384, %v399
      %v405 = vmul.f32 %v384, %v403
      %v406 = vadd.f32 %v380, %v404
      %v407 = vadd.f32 %v381, %v405
      %408 = vset.pattern.permute.xlu0 2
      %409 = vperm.xlu0 %408, %v353
      %v410 = vpop.permute.xlu0 %409
      %v412 = vlaneseq
      %v413 = vshrl.u32 %v412, 7
      %v414 = vsub.s32 2, %v413
      %v415 = vrot.slane %v351, %v414
      %v416 = vlaneseq
      %v417 = vshrl.u32 %v416, 7
      %v418 = vsub.s32 6, %v417
      %v419 = vrot.slane %v351, %v418
      %v422 = vlaneseq
      %v423 = vshrl.u32 %v422, 7
      %v424 = vsub.s32 2, %v423
      %v425 = vrot.slane %v415, %v424
      %v426 = vlaneseq
      %v427 = vshrl.u32 %v426, 7
      %v428 = vsub.s32 2, %v427
      %v429 = vrot.slane %v419, %v428
      %v430 = vmul.f32 %v410, %v425
      %v431 = vmul.f32 %v410, %v429
      %v432 = vadd.f32 %v406, %v430
      %v433 = vadd.f32 %v407, %v431
      %434 = vset.pattern.permute.xlu0 3
      %435 = vperm.xlu0 %434, %v353
      %v436 = vpop.permute.xlu0 %435
      %v438 = vlaneseq
      %v439 = vshrl.u32 %v438, 7
      %v440 = vsub.s32 3, %v439
      %v441 = vrot.slane %v351, %v440
      %v442 = vlaneseq
      %v443 = vshrl.u32 %v442, 7
      %v444 = vsub.s32 7, %v443
      %v445 = vrot.slane %v351, %v444
      %v448 = vlaneseq
      %v449 = vshrl.u32 %v448, 7
      %v450 = vsub.s32 3, %v449
      %v451 = vrot.slane %v441, %v450
      %v452 = vlaneseq
      %v453 = vshrl.u32 %v452, 7
      %v454 = vsub.s32 3, %v453
      %v455 = vrot.slane %v445, %v454
      %v456 = vmul.f32 %v436, %v451
      %v457 = vmul.f32 %v436, %v455
      %v458 = vadd.f32 %v432, %v456
      %v459 = vadd.f32 %v433, %v457
      %v461 = vcombine.high %v352, %v352
      %v463 = vmul.f32 %v458, %v352
      %v464 = vmul.f32 %v459, %v461
      %v467 = vrot.slane %v463, 1
      %v468 = vrot.slane %v464, 1
      %v471 = vadd.f32 %v463, %v467
      %v472 = vadd.f32 %v464, %v468
      %v473 = vrot.slane %v463, 2
      %v474 = vrot.slane %v464, 2
      %v477 = vadd.f32 %v471, %v473
      %v478 = vadd.f32 %v472, %v474
      %v479 = vrot.slane %v463, 3
      %v480 = vrot.slane %v464, 3
      %v483 = vadd.f32 %v477, %v479
      %v484 = vadd.f32 %v478, %v480
      %v485 = vxor.u32 %v483, 2147483648
      %v486 = vxor.u32 %v484, 2147483648
      %v487 = vmul.f32 %v485, 1.442695
      %v488 = vpow.pop %v487
      %v489 = vmul.f32 %v486, 1.442695
      %v490 = vpow.pop %v489
      %v491 = vadd.f32 %v488, 1.0
      %v492 = vadd.f32 %v490, 1.0
      %v493 = vrcp.pop %v491
      %v494 = vmul.f32 1.0, %v493
      %v495 = vrcp.pop %v492
      %v496 = vmul.f32 1.0, %v495
      %498 = vset.pattern.permute.xlu0 0
      %499 = vperm.xlu0 %498, %v354
      %v500 = vpop.permute.xlu0 %499
      %v502 = vlaneseq
      %v503 = vshrl.u32 %v502, 7
      %v504 = vsub.s32 0, %v503
      %v505 = vrot.slane %v352, %v504
      %v506 = vlaneseq
      %v507 = vshrl.u32 %v506, 7
      %v508 = vsub.s32 4, %v507
      %v509 = vrot.slane %v352, %v508
      %v512 = vlaneseq
      %v513 = vshrl.u32 %v512, 7
      %v514 = vsub.s32 0, %v513
      %v515 = vrot.slane %v505, %v514
      %v516 = vlaneseq
      %v517 = vshrl.u32 %v516, 7
      %v518 = vsub.s32 0, %v517
      %v519 = vrot.slane %v509, %v518
      %v520 = vmul.f32 %v500, %v515
      %v521 = vmul.f32 %v500, %v519
      %522 = vset.pattern.permute.xlu0 1
      %523 = vperm.xlu0 %522, %v354
      %v524 = vpop.permute.xlu0 %523
      %v526 = vlaneseq
      %v527 = vshrl.u32 %v526, 7
      %v528 = vsub.s32 1, %v527
      %v529 = vrot.slane %v352, %v528
      %v530 = vlaneseq
      %v531 = vshrl.u32 %v530, 7
      %v532 = vsub.s32 5, %v531
      %v533 = vrot.slane %v352, %v532
      %v536 = vlaneseq
      %v537 = vshrl.u32 %v536, 7
      %v538 = vsub.s32 1, %v537
      %v539 = vrot.slane %v529, %v538
      %v540 = vlaneseq
      %v541 = vshrl.u32 %v540, 7
      %v542 = vsub.s32 1, %v541
      %v543 = vrot.slane %v533, %v542
      %v544 = vmul.f32 %v524, %v539
      %v545 = vmul.f32 %v524, %v543
      %v546 = vadd.f32 %v520, %v544
      %v547 = vadd.f32 %v521, %v545
      %548 = vset.pattern.permute.xlu0 2
      %549 = vperm.xlu0 %548, %v354
      %v550 = vpop.permute.xlu0 %549
      %v552 = vlaneseq
      %v553 = vshrl.u32 %v552, 7
      %v554 = vsub.s32 2, %v553
      %v555 = vrot.slane %v352, %v554
      %v556 = vlaneseq
      %v557 = vshrl.u32 %v556, 7
      %v558 = vsub.s32 6, %v557
      %v559 = vrot.slane %v352, %v558
      %v562 = vlaneseq
      %v563 = vshrl.u32 %v562, 7
      %v564 = vsub.s32 2, %v563
      %v565 = vrot.slane %v555, %v564
      %v566 = vlaneseq
      %v567 = vshrl.u32 %v566, 7
      %v568 = vsub.s32 2, %v567
      %v569 = vrot.slane %v559, %v568
      %v570 = vmul.f32 %v550, %v565
      %v571 = vmul.f32 %v550, %v569
      %v572 = vadd.f32 %v546, %v570
      %v573 = vadd.f32 %v547, %v571
      %574 = vset.pattern.permute.xlu0 3
      %575 = vperm.xlu0 %574, %v354
      %v576 = vpop.permute.xlu0 %575
      %v578 = vlaneseq
      %v579 = vshrl.u32 %v578, 7
      %v580 = vsub.s32 3, %v579
      %v581 = vrot.slane %v352, %v580
      %v582 = vlaneseq
      %v583 = vshrl.u32 %v582, 7
      %v584 = vsub.s32 7, %v583
      %v585 = vrot.slane %v352, %v584
      %v588 = vlaneseq
      %v589 = vshrl.u32 %v588, 7
      %v590 = vsub.s32 3, %v589
      %v591 = vrot.slane %v581, %v590
      %v592 = vlaneseq
      %v593 = vshrl.u32 %v592, 7
      %v594 = vsub.s32 3, %v593
      %v595 = vrot.slane %v585, %v594
      %v596 = vmul.f32 %v576, %v591
      %v597 = vmul.f32 %v576, %v595
      %v598 = vadd.f32 %v572, %v596
      %v599 = vadd.f32 %v573, %v597
      %v600 = vlaneseq
      %v601 = vshrl.u32 %v600, 7
      %v602 = vsub.s32 0, %v601
      %v603 = vrot.slane %v494, %v602
      %v604 = vlaneseq
      %v605 = vshrl.u32 %v604, 7
      %v606 = vsub.s32 0, %v605
      %v607 = vrot.slane %v496, %v606
      %v608 = vmul.f32 %v603, %v598
      %v609 = vmul.f32 %v607, %v599
      %v612 = vcombine.low %v608, %v609
      %v614 = vadd.f32 %v351, %v612
      %616 = vset.pattern.permute.xlu0 0
      %617 = vperm.xlu0 %616, %v355
      %v618 = vpop.permute.xlu0 %617
      %v621 = vlaneseq
      %v622 = vshrl.u32 %v621, 7
      %v623 = vsub.s32 0, %v622
      %v624 = vrot.slane %v614, %v623
      %v625 = vlaneseq
      %v626 = vshrl.u32 %v625, 7
      %v627 = vsub.s32 4, %v626
      %v628 = vrot.slane %v614, %v627
      %v631 = vlaneseq
      %v632 = vshrl.u32 %v631, 7
      %v633 = vsub.s32 0, %v632
      %v634 = vrot.slane %v624, %v633
      %v635 = vlaneseq
      %v636 = vshrl.u32 %v635, 7
      %v637 = vsub.s32 0, %v636
      %v638 = vrot.slane %v628, %v637
      %v639 = vmul.f32 %v618, %v634
      %v640 = vmul.f32 %v618, %v638
      %641 = vset.pattern.permute.xlu0 1
      %642 = vperm.xlu0 %641, %v355
      %v643 = vpop.permute.xlu0 %642
      %v645 = vlaneseq
      %v646 = vshrl.u32 %v645, 7
      %v647 = vsub.s32 1, %v646
      %v648 = vrot.slane %v614, %v647
      %v649 = vlaneseq
      %v650 = vshrl.u32 %v649, 7
      %v651 = vsub.s32 5, %v650
      %v652 = vrot.slane %v614, %v651
      %v655 = vlaneseq
      %v656 = vshrl.u32 %v655, 7
      %v657 = vsub.s32 1, %v656
      %v658 = vrot.slane %v648, %v657
      %v659 = vlaneseq
      %v660 = vshrl.u32 %v659, 7
      %v661 = vsub.s32 1, %v660
      %v662 = vrot.slane %v652, %v661
      %v663 = vmul.f32 %v643, %v658
      %v664 = vmul.f32 %v643, %v662
      %v665 = vadd.f32 %v639, %v663
      %v666 = vadd.f32 %v640, %v664
      %667 = vset.pattern.permute.xlu0 2
      %668 = vperm.xlu0 %667, %v355
      %v669 = vpop.permute.xlu0 %668
      %v671 = vlaneseq
      %v672 = vshrl.u32 %v671, 7
      %v673 = vsub.s32 2, %v672
      %v674 = vrot.slane %v614, %v673
      %v675 = vlaneseq
      %v676 = vshrl.u32 %v675, 7
      %v677 = vsub.s32 6, %v676
      %v678 = vrot.slane %v614, %v677
      %v681 = vlaneseq
      %v682 = vshrl.u32 %v681, 7
      %v683 = vsub.s32 2, %v682
      %v684 = vrot.slane %v674, %v683
      %v685 = vlaneseq
      %v686 = vshrl.u32 %v685, 7
      %v687 = vsub.s32 2, %v686
      %v688 = vrot.slane %v678, %v687
      %v689 = vmul.f32 %v669, %v684
      %v690 = vmul.f32 %v669, %v688
      %v691 = vadd.f32 %v665, %v689
      %v692 = vadd.f32 %v666, %v690
      %693 = vset.pattern.permute.xlu0 3
      %694 = vperm.xlu0 %693, %v355
      %v695 = vpop.permute.xlu0 %694
      %v697 = vlaneseq
      %v698 = vshrl.u32 %v697, 7
      %v699 = vsub.s32 3, %v698
      %v700 = vrot.slane %v614, %v699
      %v701 = vlaneseq
      %v702 = vshrl.u32 %v701, 7
      %v703 = vsub.s32 7, %v702
      %v704 = vrot.slane %v614, %v703
      %v707 = vlaneseq
      %v708 = vshrl.u32 %v707, 7
      %v709 = vsub.s32 3, %v708
      %v710 = vrot.slane %v700, %v709
      %v711 = vlaneseq
      %v712 = vshrl.u32 %v711, 7
      %v713 = vsub.s32 3, %v712
      %v714 = vrot.slane %v704, %v713
      %v715 = vmul.f32 %v695, %v710
      %v716 = vmul.f32 %v695, %v714
      %v717 = vadd.f32 %v691, %v715
      %v718 = vadd.f32 %v692, %v716
      %s719 = scalar_lea.vmem %s2, 4
      %v720 = vld [vmem:[%s719] sm:$0xf]
      %s721 = scalar_lea.vmem %s3, 4
      %v722 = vld [vmem:[%s721] sm:$0xf]
      %s723 = scalar_lea.vmem %s4, 2
      %v724 = vld [vmem:[%s723] sm:$0x3]
      %726 = vset.pattern.permute.xlu0 0
      %727 = vperm.xlu0 %726, %v720
      %v728 = vpop.permute.xlu0 %727
      %v730 = vmul.f32 %v728, %v634
      %v731 = vmul.f32 %v728, %v638
      %732 = vset.pattern.permute.xlu0 1
      %733 = vperm.xlu0 %732, %v720
      %v734 = vpop.permute.xlu0 %733
      %v736 = vmul.f32 %v734, %v658
      %v737 = vmul.f32 %v734, %v662
      %v738 = vadd.f32 %v730, %v736
      %v739 = vadd.f32 %v731, %v737
      %740 = vset.pattern.permute.xlu0 2
      %741 = vperm.xlu0 %740, %v720
      %v742 = vpop.permute.xlu0 %741
      %v744 = vmul.f32 %v742, %v684
      %v745 = vmul.f32 %v742, %v688
      %v746 = vadd.f32 %v738, %v744
      %v747 = vadd.f32 %v739, %v745
      %748 = vset.pattern.permute.xlu0 3
      %749 = vperm.xlu0 %748, %v720
      %v750 = vpop.permute.xlu0 %749
      %v752 = vmul.f32 %v750, %v710
      %v753 = vmul.f32 %v750, %v714
      %v754 = vadd.f32 %v746, %v752
      %v755 = vadd.f32 %v747, %v753
      %v756 = vmul.f32 %v754, %v352
      %v757 = vmul.f32 %v755, %v461
      %v760 = vrot.slane %v756, 1
      %v761 = vrot.slane %v757, 1
      %v764 = vadd.f32 %v756, %v760
      %v765 = vadd.f32 %v757, %v761
      %v766 = vrot.slane %v756, 2
      %v767 = vrot.slane %v757, 2
      %v770 = vadd.f32 %v764, %v766
      %v771 = vadd.f32 %v765, %v767
      %v772 = vrot.slane %v756, 3
      %v773 = vrot.slane %v757, 3
      %v776 = vadd.f32 %v770, %v772
      %v777 = vadd.f32 %v771, %v773
      %v778 = vxor.u32 %v776, 2147483648
      %v779 = vxor.u32 %v777, 2147483648
      %v780 = vmul.f32 %v778, 1.442695
      %v781 = vpow.pop %v780
      %v782 = vmul.f32 %v779, 1.442695
      %v783 = vpow.pop %v782
      %v784 = vadd.f32 %v781, 1.0
      %v785 = vadd.f32 %v783, 1.0
      %v786 = vrcp.pop %v784
      %v787 = vmul.f32 1.0, %v786
      %v788 = vrcp.pop %v785
      %v789 = vmul.f32 1.0, %v788
      %791 = vset.pattern.permute.xlu0 0
      %792 = vperm.xlu0 %791, %v722
      %v793 = vpop.permute.xlu0 %792
      %v795 = vmul.f32 %v793, %v515
      %v796 = vmul.f32 %v793, %v519
      %797 = vset.pattern.permute.xlu0 1
      %798 = vperm.xlu0 %797, %v722
      %v799 = vpop.permute.xlu0 %798
      %v801 = vmul.f32 %v799, %v539
      %v802 = vmul.f32 %v799, %v543
      %v803 = vadd.f32 %v795, %v801
      %v804 = vadd.f32 %v796, %v802
      %805 = vset.pattern.permute.xlu0 2
      %806 = vperm.xlu0 %805, %v722
      %v807 = vpop.permute.xlu0 %806
      %v809 = vmul.f32 %v807, %v565
      %v810 = vmul.f32 %v807, %v569
      %v811 = vadd.f32 %v803, %v809
      %v812 = vadd.f32 %v804, %v810
      %813 = vset.pattern.permute.xlu0 3
      %814 = vperm.xlu0 %813, %v722
      %v815 = vpop.permute.xlu0 %814
      %v817 = vmul.f32 %v815, %v591
      %v818 = vmul.f32 %v815, %v595
      %v819 = vadd.f32 %v811, %v817
      %v820 = vadd.f32 %v812, %v818
      %v821 = vlaneseq
      %v822 = vshrl.u32 %v821, 7
      %v823 = vsub.s32 0, %v822
      %v824 = vrot.slane %v787, %v823
      %v825 = vlaneseq
      %v826 = vshrl.u32 %v825, 7
      %v827 = vsub.s32 0, %v826
      %v828 = vrot.slane %v789, %v827
      %v829 = vmul.f32 %v824, %v819
      %v830 = vmul.f32 %v828, %v820
      %v833 = vcombine.low %v829, %v830
      %v835 = vadd.f32 %v614, %v833
      %837 = vset.pattern.permute.xlu0 0
      %838 = vperm.xlu0 %837, %v724
      %v839 = vpop.permute.xlu0 %838
      %v842 = vlaneseq
      %v843 = vshrl.u32 %v842, 7
      %v844 = vsub.s32 0, %v843
      %v845 = vrot.slane %v835, %v844
      %v846 = vlaneseq
      %v847 = vshrl.u32 %v846, 7
      %v848 = vsub.s32 4, %v847
      %v849 = vrot.slane %v835, %v848
      %v852 = vlaneseq
      %v853 = vshrl.u32 %v852, 7
      %v854 = vsub.s32 0, %v853
      %v855 = vrot.slane %v845, %v854
      %v856 = vlaneseq
      %v857 = vshrl.u32 %v856, 7
      %v858 = vsub.s32 0, %v857
      %v859 = vrot.slane %v849, %v858
      %v860 = vmul.f32 %v839, %v855
      %v861 = vmul.f32 %v839, %v859
      %862 = vset.pattern.permute.xlu0 1
      %863 = vperm.xlu0 %862, %v724
      %v864 = vpop.permute.xlu0 %863
      %v866 = vlaneseq
      %v867 = vshrl.u32 %v866, 7
      %v868 = vsub.s32 1, %v867
      %v869 = vrot.slane %v835, %v868
      %v870 = vlaneseq
      %v871 = vshrl.u32 %v870, 7
      %v872 = vsub.s32 5, %v871
      %v873 = vrot.slane %v835, %v872
      %v876 = vlaneseq
      %v877 = vshrl.u32 %v876, 7
      %v878 = vsub.s32 1, %v877
      %v879 = vrot.slane %v869, %v878
      %v880 = vlaneseq
      %v881 = vshrl.u32 %v880, 7
      %v882 = vsub.s32 1, %v881
      %v883 = vrot.slane %v873, %v882
      %v884 = vmul.f32 %v864, %v879
      %v885 = vmul.f32 %v864, %v883
      %v886 = vadd.f32 %v860, %v884
      %v887 = vadd.f32 %v861, %v885
      %888 = vset.pattern.permute.xlu0 2
      %889 = vperm.xlu0 %888, %v724
      %v890 = vpop.permute.xlu0 %889
      %v892 = vlaneseq
      %v893 = vshrl.u32 %v892, 7
      %v894 = vsub.s32 2, %v893
      %v895 = vrot.slane %v835, %v894
      %v896 = vlaneseq
      %v897 = vshrl.u32 %v896, 7
      %v898 = vsub.s32 6, %v897
      %v899 = vrot.slane %v835, %v898
      %v902 = vlaneseq
      %v903 = vshrl.u32 %v902, 7
      %v904 = vsub.s32 2, %v903
      %v905 = vrot.slane %v895, %v904
      %v906 = vlaneseq
      %v907 = vshrl.u32 %v906, 7
      %v908 = vsub.s32 2, %v907
      %v909 = vrot.slane %v899, %v908
      %v910 = vmul.f32 %v890, %v905
      %v911 = vmul.f32 %v890, %v909
      %v912 = vadd.f32 %v886, %v910
      %v913 = vadd.f32 %v887, %v911
      %914 = vset.pattern.permute.xlu0 3
      %915 = vperm.xlu0 %914, %v724
      %v916 = vpop.permute.xlu0 %915
      %v918 = vlaneseq
      %v919 = vshrl.u32 %v918, 7
      %v920 = vsub.s32 3, %v919
      %v921 = vrot.slane %v835, %v920
      %v922 = vlaneseq
      %v923 = vshrl.u32 %v922, 7
      %v924 = vsub.s32 7, %v923
      %v925 = vrot.slane %v835, %v924
      %v928 = vlaneseq
      %v929 = vshrl.u32 %v928, 7
      %v930 = vsub.s32 3, %v929
      %v931 = vrot.slane %v921, %v930
      %v932 = vlaneseq
      %v933 = vshrl.u32 %v932, 7
      %v934 = vsub.s32 3, %v933
      %v935 = vrot.slane %v925, %v934
      %v936 = vmul.f32 %v916, %v931
      %v937 = vmul.f32 %v916, %v935
      %v938 = vadd.f32 %v912, %v936
      %v939 = vadd.f32 %v913, %v937
      %s940 = scalar_lea.vmem %s2, 8
      %v941 = vld [vmem:[%s940] sm:$0xf]
      %s942 = scalar_lea.vmem %s3, 8
      %v943 = vld [vmem:[%s942] sm:$0xf]
      %s944 = scalar_lea.vmem %s4, 4
      %v945 = vld [vmem:[%s944] sm:$0x3]
      %947 = vset.pattern.permute.xlu0 0
      %948 = vperm.xlu0 %947, %v941
      %v949 = vpop.permute.xlu0 %948
      %v951 = vmul.f32 %v949, %v855
      %v952 = vmul.f32 %v949, %v859
      %953 = vset.pattern.permute.xlu0 1
      %954 = vperm.xlu0 %953, %v941
      %v955 = vpop.permute.xlu0 %954
      %v957 = vmul.f32 %v955, %v879
      %v958 = vmul.f32 %v955, %v883
      %v959 = vadd.f32 %v951, %v957
      %v960 = vadd.f32 %v952, %v958
      %961 = vset.pattern.permute.xlu0 2
      %962 = vperm.xlu0 %961, %v941
      %v963 = vpop.permute.xlu0 %962
      %v965 = vmul.f32 %v963, %v905
      %v966 = vmul.f32 %v963, %v909
      %v967 = vadd.f32 %v959, %v965
      %v968 = vadd.f32 %v960, %v966
      %969 = vset.pattern.permute.xlu0 3
      %970 = vperm.xlu0 %969, %v941
      %v971 = vpop.permute.xlu0 %970
      %v973 = vmul.f32 %v971, %v931
      %v974 = vmul.f32 %v971, %v935
      %v975 = vadd.f32 %v967, %v973
      %v976 = vadd.f32 %v968, %v974
      %v977 = vmul.f32 %v975, %v352
      %v978 = vmul.f32 %v976, %v461
      %v981 = vrot.slane %v977, 1
      %v982 = vrot.slane %v978, 1
      %v985 = vadd.f32 %v977, %v981
      %v986 = vadd.f32 %v978, %v982
      %v987 = vrot.slane %v977, 2
      %v988 = vrot.slane %v978, 2
      %v991 = vadd.f32 %v985, %v987
      %v992 = vadd.f32 %v986, %v988
      %v993 = vrot.slane %v977, 3
      %v994 = vrot.slane %v978, 3
      %v997 = vadd.f32 %v991, %v993
      %v998 = vadd.f32 %v992, %v994
      %v999 = vxor.u32 %v997, 2147483648
      %v1000 = vxor.u32 %v998, 2147483648
      %v1001 = vmul.f32 %v999, 1.442695
      %v1002 = vpow.pop %v1001
      %v1003 = vmul.f32 %v1000, 1.442695
      %v1004 = vpow.pop %v1003
      %v1005 = vadd.f32 %v1002, 1.0
      %v1006 = vadd.f32 %v1004, 1.0
      %v1007 = vrcp.pop %v1005
      %v1008 = vmul.f32 1.0, %v1007
      %v1009 = vrcp.pop %v1006
      %v1010 = vmul.f32 1.0, %v1009
      %1012 = vset.pattern.permute.xlu0 0
      %1013 = vperm.xlu0 %1012, %v943
      %v1014 = vpop.permute.xlu0 %1013
      %v1016 = vmul.f32 %v1014, %v515
      %v1017 = vmul.f32 %v1014, %v519
      %1018 = vset.pattern.permute.xlu0 1
      %1019 = vperm.xlu0 %1018, %v943
      %v1020 = vpop.permute.xlu0 %1019
      %v1022 = vmul.f32 %v1020, %v539
      %v1023 = vmul.f32 %v1020, %v543
      %v1024 = vadd.f32 %v1016, %v1022
      %v1025 = vadd.f32 %v1017, %v1023
      %1026 = vset.pattern.permute.xlu0 2
      %1027 = vperm.xlu0 %1026, %v943
      %v1028 = vpop.permute.xlu0 %1027
      %v1030 = vmul.f32 %v1028, %v565
      %v1031 = vmul.f32 %v1028, %v569
      %v1032 = vadd.f32 %v1024, %v1030
      %v1033 = vadd.f32 %v1025, %v1031
      %1034 = vset.pattern.permute.xlu0 3
      %1035 = vperm.xlu0 %1034, %v943
      %v1036 = vpop.permute.xlu0 %1035
      %v1038 = vmul.f32 %v1036, %v591
      %v1039 = vmul.f32 %v1036, %v595
      %v1040 = vadd.f32 %v1032, %v1038
      %v1041 = vadd.f32 %v1033, %v1039
      %v1042 = vlaneseq
      %v1043 = vshrl.u32 %v1042, 7
      %v1044 = vsub.s32 0, %v1043
      %v1045 = vrot.slane %v1008, %v1044
      %v1046 = vlaneseq
      %v1047 = vshrl.u32 %v1046, 7
      %v1048 = vsub.s32 0, %v1047
      %v1049 = vrot.slane %v1010, %v1048
      %v1050 = vmul.f32 %v1045, %v1040
      %v1051 = vmul.f32 %v1049, %v1041
      %v1054 = vcombine.low %v1050, %v1051
      %v1056 = vadd.f32 %v835, %v1054
      %1058 = vset.pattern.permute.xlu0 0
      %1059 = vperm.xlu0 %1058, %v945
      %v1060 = vpop.permute.xlu0 %1059
      %v1063 = vlaneseq
      %v1064 = vshrl.u32 %v1063, 7
      %v1065 = vsub.s32 0, %v1064
      %v1066 = vrot.slane %v1056, %v1065
      %v1067 = vlaneseq
      %v1068 = vshrl.u32 %v1067, 7
      %v1069 = vsub.s32 4, %v1068
      %v1070 = vrot.slane %v1056, %v1069
      %v1073 = vlaneseq
      %v1074 = vshrl.u32 %v1073, 7
      %v1075 = vsub.s32 0, %v1074
      %v1076 = vrot.slane %v1066, %v1075
      %v1077 = vlaneseq
      %v1078 = vshrl.u32 %v1077, 7
      %v1079 = vsub.s32 0, %v1078
      %v1080 = vrot.slane %v1070, %v1079
      %v1081 = vmul.f32 %v1060, %v1076
      %v1082 = vmul.f32 %v1060, %v1080
      %1083 = vset.pattern.permute.xlu0 1
      %1084 = vperm.xlu0 %1083, %v945
      %v1085 = vpop.permute.xlu0 %1084
      %v1087 = vlaneseq
      %v1088 = vshrl.u32 %v1087, 7
      %v1089 = vsub.s32 1, %v1088
      %v1090 = vrot.slane %v1056, %v1089
      %v1091 = vlaneseq
      %v1092 = vshrl.u32 %v1091, 7
      %v1093 = vsub.s32 5, %v1092
      %v1094 = vrot.slane %v1056, %v1093
      %v1097 = vlaneseq
      %v1098 = vshrl.u32 %v1097, 7
      %v1099 = vsub.s32 1, %v1098
      %v1100 = vrot.slane %v1090, %v1099
      %v1101 = vlaneseq
      %v1102 = vshrl.u32 %v1101, 7
      %v1103 = vsub.s32 1, %v1102
      %v1104 = vrot.slane %v1094, %v1103
      %v1105 = vmul.f32 %v1085, %v1100
      %v1106 = vmul.f32 %v1085, %v1104
      %v1107 = vadd.f32 %v1081, %v1105
      %v1108 = vadd.f32 %v1082, %v1106
      %1109 = vset.pattern.permute.xlu0 2
      %1110 = vperm.xlu0 %1109, %v945
      %v1111 = vpop.permute.xlu0 %1110
      %v1113 = vlaneseq
      %v1114 = vshrl.u32 %v1113, 7
      %v1115 = vsub.s32 2, %v1114
      %v1116 = vrot.slane %v1056, %v1115
      %v1117 = vlaneseq
      %v1118 = vshrl.u32 %v1117, 7
      %v1119 = vsub.s32 6, %v1118
      %v1120 = vrot.slane %v1056, %v1119
      %v1123 = vlaneseq
      %v1124 = vshrl.u32 %v1123, 7
      %v1125 = vsub.s32 2, %v1124
      %v1126 = vrot.slane %v1116, %v1125
      %v1127 = vlaneseq
      %v1128 = vshrl.u32 %v1127, 7
      %v1129 = vsub.s32 2, %v1128
      %v1130 = vrot.slane %v1120, %v1129
      %v1131 = vmul.f32 %v1111, %v1126
      %v1132 = vmul.f32 %v1111, %v1130
      %v1133 = vadd.f32 %v1107, %v1131
      %v1134 = vadd.f32 %v1108, %v1132
      %1135 = vset.pattern.permute.xlu0 3
      %1136 = vperm.xlu0 %1135, %v945
      %v1137 = vpop.permute.xlu0 %1136
      %v1139 = vlaneseq
      %v1140 = vshrl.u32 %v1139, 7
      %v1141 = vsub.s32 3, %v1140
      %v1142 = vrot.slane %v1056, %v1141
      %v1143 = vlaneseq
      %v1144 = vshrl.u32 %v1143, 7
      %v1145 = vsub.s32 7, %v1144
      %v1146 = vrot.slane %v1056, %v1145
      %v1149 = vlaneseq
      %v1150 = vshrl.u32 %v1149, 7
      %v1151 = vsub.s32 3, %v1150
      %v1152 = vrot.slane %v1142, %v1151
      %v1153 = vlaneseq
      %v1154 = vshrl.u32 %v1153, 7
      %v1155 = vsub.s32 3, %v1154
      %v1156 = vrot.slane %v1146, %v1155
      %v1157 = vmul.f32 %v1137, %v1152
      %v1158 = vmul.f32 %v1137, %v1156
      %v1159 = vadd.f32 %v1133, %v1157
      %v1160 = vadd.f32 %v1134, %v1158
      %1161 = vst [vmem:[%s339] sm:$0xff] %v1056
      %v1164 = vrot.slane %v938, 6
      %v1165 = vrot.slane %v939, 6
      %v1170 = vrot.slane %v1159, 4
      %v1171 = vrot.slane %v1160, 4
      %vm1174 = vcmask 1041408
      %v1175 = vsel %vm1174, %v717, %v1164
      %v1176 = vsel %vm1174, %v718, %v1165
      %vm1177 = vcmask 1043456
      %v1178 = vsel %vm1177, %v1175, %v1170
      %v1179 = vsel %vm1177, %v1176, %v1171
      %1180 = vst [vmem:[%s349] sm:$0x3f] %v1178
      %1181 = vst [vmem:[%s349 + $0x8] sm:$0x3f] %v1179
      %s1182 = smul.u32 2, %s23
      %p1183 = scmp.lt.s32.totalorder %s22, 1
      %s1184 = scalar_select %p1183, %s22, 1
      %p1185 = scmp.lt.s32.totalorder %s1182, 1
      %s1186 = scalar_select %p1185, %s1182, 1
      %s1187 = smul.addr %s1184, 2
      %s1188 = sadd.s32 %s1186, %s1187
      %s1189 = smul.addr %s1188, 4
      %s1190 = scalar_lea.vmem %s5, %s1189
      %s1191 = smul.u32 2, %s23
      %p1192 = scmp.lt.s32.totalorder %s22, 1
      %s1193 = scalar_select %p1192, %s22, 1
      %p1194 = scmp.lt.s32.totalorder %s1191, 1
      %s1195 = scalar_select %p1194, %s1191, 1
      %s1196 = smul.addr %s1193, 2
      %s1197 = sadd.s32 %s1195, %s1196
      %s1198 = smul.addr %s1197, 8
      %s1199 = scalar_lea.vmem %s6, %s1198
      // Predicated region
      $region41: #{tsa_loop.1} parent=39 // pred_check
        %p1200 = pneg %p169
      $region42: #{tsa_loop.1} parent=39 // pred_check_branch
        %1202 = sbr.rel (%p1200) target = $region44
      $region43: #{tsa_loop.1} parent=39 // pred_region
        %s1203 = smul.u32 2, %s23
      $region44: #{tsa_loop.1} parent=39 // pred_fallthru
        _
      // Predicated region
      $region45: #{tsa_loop.1} parent=39 // pred_check
        %p1204 = pneg %p197
      $region46: #{tsa_loop.1} parent=39 // pred_check_branch
        %1206 = sbr.rel (%p1204) target = $region48
      $region47: #{tsa_loop.1} parent=39 // pred_region
        %s1207 = smul.u32 2, %s23
      $region48: #{tsa_loop.1} parent=39 // pred_fallthru
        _
    $region40: #{tsa_loop.1} parent=5 // pred_fallthru
      _
    %p1208 = scmp.le.s32.totalorder 2, %s13
    // Predicated region
    $region49: #{tsa_loop.1} parent=5 // pred_check
      %p1209 = pneg %p1208
    $region50: #{tsa_loop.1} parent=5 // pred_check_branch
      %1211 = sbr.rel (%p1209) target = $region52
    $region51: #{tsa_loop.1} parent=5 // pred_region
      %s1212 = ssub.s32 %s13, 2
      // Predicated region
      $region53: #{tsa_loop.1} parent=51 // pred_check
        %p1213 = pneg %p175
      $region54: #{tsa_loop.1} parent=51 // pred_check_branch
        %1215 = sbr.rel (%p1213) target = $region56
      $region55: #{tsa_loop.1} parent=51 // pred_region
        %s1216 = smul.u32 2, %s25
        %p1217 = scmp.lt.s32.totalorder %s24, 1
        %s1218 = scalar_select %p1217, %s24, 1
        %p1219 = scmp.lt.s32.totalorder %s1216, 1
        %s1220 = scalar_select %p1219, %s1216, 1
        %s1221 = smul.addr %s1218, 2
        %s1222 = sadd.s32 %s1220, %s1221
        %s1223 = smul.addr %s1222, 4
        %s1224 = scalar_lea.vmem %s5, %s1223
      $region56: #{tsa_loop.1} parent=51 // pred_fallthru
        _
      // Predicated region
      $region57: #{tsa_loop.1} parent=51 // pred_check
        %p1225 = pneg %p203
      $region58: #{tsa_loop.1} parent=51 // pred_check_branch
        %1227 = sbr.rel (%p1225) target = $region60
      $region59: #{tsa_loop.1} parent=51 // pred_region
        %s1228 = smul.u32 2, %s25
        %p1229 = scmp.lt.s32.totalorder %s24, 1
        %s1230 = scalar_select %p1229, %s24, 1
        %p1231 = scmp.lt.s32.totalorder %s1228, 1
        %s1232 = scalar_select %p1231, %s1228, 1
        %s1233 = smul.addr %s1230, 2
        %s1234 = sadd.s32 %s1232, %s1233
        %s1235 = smul.addr %s1234, 8
        %s1236 = scalar_lea.vmem %s6, %s1235
      $region60: #{tsa_loop.1} parent=51 // pred_fallthru
        _
    $region52: #{tsa_loop.1} parent=5 // pred_fallthru
      _
  $region6: #{tsa_loop.1} parent=0 // loop_footer
    %s17 = sadd.s32 1, %s13
  $region7: #{tsa_loop.1} parent=0 // loop_footer_branch
    %12 = sbr.rel target = $region3
  $region8: #{tsa_loop.1} parent=0 // loop_exit
    _

</llo_original>
